<compile_context>
chip_gen: v7x
topology: tpu7x:2x2x1
jax: 0.10.0
libtpu: 0.0.40
codegen_flags: <defaults>
</compile_context>

<pallas_src>
from math import sqrt

import jax
import jax.numpy as jnp
from jax.experimental import pallas as pl
from jax.experimental.pallas import tpu as pltpu


def _sigmoid(v):
    # exp on the EUP, reciprocal on the EUP approx path (frees VALU slots)
    return pl.reciprocal(1.0 + jnp.exp(-v), approx=True)


def _make_kernel(W, G, Ksp, sp_pad, conv_pad):
    """Build the fused kernel closed over the static configuration."""

    def kernel(x_ref, bn_ref, wc1_ref, wc2_ref, mcm_ref, wband_ref, wbig_ref, o_ref):
        bt, H, WC = x_ref.shape                   # WC = W * Cin * G  (lane-dense, 256 here)
        WG = W * G
        NO = wbig_ref.shape[1]                    # Wo * Cout * G

        # ---- BatchNorm3d (eval, folded) + ReLU: f32, 256-lane dense ------------------
        x = x_ref[...].astype(jnp.float32)                                  # (bt, H, WC)
        y = jnp.maximum(x * bn_ref[0] + bn_ref[1], 0.0)

        # ---- channel attention (SE-style group MLP) ----------------------------------
        # spatial average is folded into wc1; per-(c,g)->per-(w,c,g) expansion folded into wc2
        rowsum = jnp.sum(y, axis=1)                                         # (bt, WC)
        hid = jnp.maximum(
            jnp.dot(rowsum, wc1_ref[...], preferred_element_type=jnp.float32), 0.0)
        att_c = _sigmoid(
            jnp.dot(hid, wc2_ref[...], preferred_element_type=jnp.float32)) # (bt, WC)

        # ---- spatial attention: P4 KxK conv on the channel-mean map ------------------
        # channel mean via one matmul; conv via Ksp accumulated banded matmuls
        # (W-padding + channel expansion folded into wband); only H needs a small zero pad.
        y2d = y.reshape(bt * H, WC)
        cmean = jnp.dot(y2d, mcm_ref[...],
                        preferred_element_type=jnp.float32).reshape(bt, H, WG)
        zrow = jnp.zeros((bt, sp_pad, WG), jnp.float32)
        cpad = jnp.concatenate([zrow, cmean, zrow], axis=1)                 # (bt, H+2p, WG)
        acc = jnp.dot(cpad[:, 0:H, :].reshape(bt * H, WG), wband_ref[0],
                      preferred_element_type=jnp.float32)                   # (bt*H, WC)
        for u in range(1, Ksp):
            acc = acc + jnp.dot(cpad[:, u:u + H, :].reshape(bt * H, WG), wband_ref[u],
                                preferred_element_type=jnp.float32)
        att_s = _sigmoid(acc).reshape(bt, H, WC)

        # ---- gate (all 256-lane dense, no concats / replication) ---------------------
        y_att = y * att_c[:, None, :] * att_s                               # (bt, H, WC)

        # ---- conv zero-ring + 2x2/2 avg-pool along H (W-pool folded into wbig) -------
        if conv_pad == 1:
            top = y_att[:, 0:1, :]                                          # pairs with pad row
            mid = y_att[:, 1:H - 1, :].reshape(bt, (H - 2) // 2, 2, WC)
            mid = mid[:, :, 0, :] + mid[:, :, 1, :]
            bot = y_att[:, H - 1:H, :]
            rp = jnp.concatenate([top, mid, bot], axis=1)                   # (bt, Ho, WC)
        else:
            rr = y_att.reshape(bt, H // 2, 2, WC)
            rp = rr[:, :, 0, :] + rr[:, :, 1, :]
        Ho = rp.shape[1]

        # ---- fused (W zero-ring + W-pool + 1x1 P4 group conv): ONE bf16 MXU matmul ---
        out = jnp.dot(rp.reshape(bt * Ho, WC).astype(jnp.bfloat16), wbig_ref[...],
                      preferred_element_type=jnp.float32)
        o_ref[...] = out.reshape(bt, Ho, NO)

    return kernel


def fa_p4_transition_block2d_forward(x, gamma, beta, run_mean, run_var,
                                     conv_w, att_c_w1, att_c_w2, att_s_w,
                                     eps=2e-5, conv_padding=1, batch_tile=None):
    """x: [B, Cin, 4, H, W] f32 -> [B, Cout, 4, (H+2p)//2, (W+2p)//2] f32."""
    B, Cin, G, H, W = x.shape
    Cout = conv_w.shape[0]
    Ksp = att_s_w.shape[-1]
    sp_pad = Ksp // 2
    Cmid = att_c_w1.shape[0]
    Cin4, Cout4 = Cin * G, Cout * G
    assert conv_padding in (0, 1), "fused pool path supports padding 0 or 1"
    Hp, Wp = H + 2 * conv_padding, W + 2 * conv_padding
    assert Hp % 2 == 0 and Wp % 2 == 0, "2x2/2 pooling needs even padded spatial dims"
    Ho, Wo = Hp // 2, Wp // 2
    WC, WG = W * Cin4, W * G
    f32 = jnp.float32

    # --- BN fold, tiled over w so the kernel is lane-dense: (2, W*Cin*4) --------------
    scale = (gamma * jax.lax.rsqrt(run_var.astype(f32) + eps)).astype(f32)
    shift = (beta.astype(f32) - run_mean.astype(f32) * scale)
    bn = jnp.stack([jnp.tile(jnp.repeat(scale, G), W),
                    jnp.tile(jnp.repeat(shift, G), W)])                      # (2, WC)

    # --- channel attention weights -----------------------------------------------------
    # layer 1: spatial average folded in (rows tiled over w, scaled by 1/(H*W))
    c1_roll = jnp.stack([jnp.roll(att_c_w1, r, axis=2) for r in range(G)], 0)   # (r,m,c,s)
    wc1_f = jnp.transpose(c1_roll, (2, 3, 1, 0)).reshape(Cin4, Cmid * G)
    wc1_big = (jnp.tile(wc1_f, (W, 1)) / float(H * W)).astype(f32)              # (WC, Cmid*G)
    # layer 2: per-(c,g) -> per-(w,c,g) gate replication folded in (replication commutes
    # with the elementwise sigmoid)
    c2_roll = jnp.stack([jnp.roll(att_c_w2, r, axis=2) for r in range(G)], 0)   # (r,c,m,s)
    wc2_f = jnp.transpose(c2_roll, (2, 3, 1, 0)).reshape(Cmid * G, Cin4)
    wc2_big = jnp.tile(wc2_f, (1, W)).astype(f32)                               # (Cmid*G, WC)

    # --- channel-mean matrix: (w,c,g) lanes -> (w,g) lanes, averaged over c -----------
    mcm = jnp.einsum('wx,gy->wgxy', jnp.eye(W, dtype=f32), jnp.eye(G, dtype=f32)) / Cin
    mcm = jnp.broadcast_to(mcm[:, None], (W, Cin, G, W, G)).reshape(WC, WG).astype(f32)

    # --- spatial-attention P4 KxK conv as Ksp banded matrices (W-pad + c-expansion folded)
    rhs_sp = jnp.stack(
        [jnp.stack([jnp.rot90(att_s_w[0, 0, (s - r) % G], k=r) for s in range(G)], 0)
         for r in range(G)], 0)                                                 # (r,s,K,K)
    v_i = jnp.arange(Ksp)[:, None, None]
    wi_i = jnp.arange(W)[None, :, None]
    wo_i = jnp.arange(W)[None, None, :]
    maskW = (wi_i == wo_i + v_i - sp_pad).astype(f32)                           # (K, Win, Wout)
    wband = jnp.einsum('vxw,rsuv->uxswr', maskW, rhs_sp)                        # (K, W, G, W, G)
    wband_big = jnp.broadcast_to(wband[:, :, :, :, None, :],
                                 (Ksp, W, G, W, Cin, G)).reshape(Ksp, WG, WC).astype(f32)

    # --- fused (W zero-ring + 2x2/2 W-pool) x (1x1 P4 group conv) weight, bf16 --------
    wr = conv_w[:, :, :, 0, 0]                                                  # (o,i,s)
    w_roll = jnp.stack([jnp.roll(wr, r, axis=2) for r in range(G)], 0)          # (r,o,i,s)
    w1_f = jnp.transpose(w_roll, (2, 3, 1, 0)).reshape(Cin4, Cout4)
    wo_idx = jnp.arange(Wo)[None, :]
    w_idx = jnp.arange(W)[:, None]
    lo = 2 * wo_idx - conv_padding
    poolW = ((w_idx == lo) | (w_idx == lo + 1)).astype(f32)                     # (W, Wo)
    wbig = (0.25 * jnp.einsum('wv,ij->wivj', poolW, w1_f)
            ).reshape(WC, Wo * Cout4).astype(jnp.bfloat16)

    # --- lane-dense bf16 input slab (halves HBM read traffic; math stays f32 in-kernel)
    x_f = jnp.transpose(x, (0, 3, 4, 1, 2)).reshape(B, H, WC).astype(jnp.bfloat16)

    # Batch tiling: per-step VMEM footprint is tiny, so prefer more grid steps (pipeline
    # overlap + both v7x TensorCores) over bigger tiles.  Never collapse the grid to 1.
    bt = batch_tile if batch_tile is not None else max(1, B // 4)
    if B % bt != 0:
        bt = 1

    kernel = _make_kernel(W, G, Ksp, sp_pad, conv_padding)
    out_f = pl.pallas_call(
        kernel,
        out_shape=jax.ShapeDtypeStruct((B, Ho, Wo * Cout4), jnp.float32),
        grid=(B // bt,),
        in_specs=[
            pl.BlockSpec((bt, H, WC), lambda b: (b, 0, 0)),
            pl.BlockSpec((2, WC), lambda b: (0, 0)),
            pl.BlockSpec((WC, Cmid * G), lambda b: (0, 0)),
            pl.BlockSpec((Cmid * G, WC), lambda b: (0, 0)),
            pl.BlockSpec((WC, WG), lambda b: (0, 0)),
            pl.BlockSpec((Ksp, WG, WC), lambda b: (0, 0, 0)),
            pl.BlockSpec((WC, Wo * Cout4), lambda b: (0, 0)),
        ],
        out_specs=pl.BlockSpec((bt, Ho, Wo * Cout4), lambda b: (b, 0, 0)),
        compiler_params=pltpu.CompilerParams(
            dimension_semantics=("parallel",),
            vmem_limit_bytes=32 * 1024 * 1024),
    )(x_f, bn, wc1_big, wc2_big, mcm, wband_big, wbig)

    # Back to PyTorch layout: [B, Cout, 4, Ho, Wo].
    return out_f.reshape(B, Ho, Wo, Cout, G).transpose(0, 3, 4, 1, 2)


def fa_p4_transition_block2d_reference(x, gamma, beta, run_mean, run_var,
                                       conv_w, att_c_w1, att_c_w2, att_s_w,
                                       eps=2e-5, conv_padding=1):
    """Pure-JAX (f32) reference with the same math, for correctness checking."""
    B, Cin, G, H, W = x.shape
    Cout = conv_w.shape[0]
    Ksp = att_s_w.shape[-1]
    sp_pad = Ksp // 2

    scale = gamma / jnp.sqrt(run_var + eps)
    shift = beta - run_mean * scale
    y = jnp.maximum(x * scale[None, :, None, None, None]
                    + shift[None, :, None, None, None], 0.0)

    # channel attention
    pooled = y.mean(axis=(-2, -1))                                              # (B, Cin, G)
    hid = jnp.stack([jnp.einsum('mcs,bcs->bm', jnp.roll(att_c_w1, r, axis=2), pooled)
                     for r in range(G)], axis=-1)                               # (B, Cmid, G)
    hid = jnp.maximum(hid, 0.0)
    att_c = jax.nn.sigmoid(
        jnp.stack([jnp.einsum('cms,bms->bc', jnp.roll(att_c_w2, r, axis=2), hid)
                   for r in range(G)], axis=-1))                                # (B, Cin, G)

    # spatial attention
    cmean = y.mean(axis=1)                                                      # (B, G, H, W)
    rhs_sp = jnp.stack(
        [jnp.stack([jnp.rot90(att_s_w[0, 0, (s - r) % G], k=r) for s in range(G)], 0)
         for r in range(G)], 0)                                                 # (G, G, K, K)
    att_s = jax.nn.sigmoid(jax.lax.conv_general_dilated(
        cmean, rhs_sp, (1, 1), [(sp_pad, sp_pad), (sp_pad, sp_pad)]))           # (B, G, H, W)

    y_att = y * att_c[:, :, :, None, None] * att_s[:, None, :, :, :]

    # 1x1 P4 group conv
    wr = conv_w[:, :, :, 0, 0]                                                  # (o, i, s)
    z = jnp.stack([jnp.einsum('ois,bishw->bohw', jnp.roll(wr, r, axis=2), y_att)
                   for r in range(G)], axis=2)                                  # (B,Cout,G,H,W)

    p = conv_padding
    z = jnp.pad(z, ((0, 0), (0, 0), (0, 0), (p, p), (p, p)))
    Hp, Wp = H + 2 * p, W + 2 * p
    return z.reshape(B, Cout, G, Hp // 2, 2, Wp // 2, 2).mean(axis=(4, 6))


if __name__ == "__main__":
    key = jax.random.PRNGKey(0)
    B, Cin, G, H, W = 2, 4, 4, 16, 16
    Cout, Ksp = 8, 7
    wscale = 1.0

    ks = jax.random.split(key, 9)
    x = jax.random.normal(ks[0], (B, Cin, G, H, W), jnp.float32)
    gamma = 1.0 + 0.1 * jax.random.normal(ks[1], (Cin,), jnp.float32)
    beta = 0.1 * jax.random.normal(ks[2], (Cin,), jnp.float32)
    run_mean = 0.1 * jax.random.normal(ks[3], (Cin,), jnp.float32)
    run_var = jnp.abs(jax.random.normal(ks[4], (Cin,), jnp.float32)) + 0.5

    conv_w = (wscale * sqrt(2.0 / (Cin * G))
              * jax.random.normal(ks[5], (Cout, Cin, G, 1, 1), jnp.float32))
    Cmid = max(1, Cin // max(1, Cin // 2))       # attgconv ratio = in_channels // 2
    att_c_w1 = (sqrt(2.0 / (Cin * G))
                * jax.random.normal(ks[6], (Cmid, Cin, G), jnp.float32))
    att_c_w2 = (sqrt(2.0 / (Cmid * G))
                * jax.random.normal(ks[7], (Cin, Cmid, G), jnp.float32))
    att_s_w = (wscale * sqrt(2.0 / (G * Ksp * Ksp))
               * jax.random.normal(ks[8], (1, 1, G, Ksp, Ksp), jnp.float32))

    out = fa_p4_transition_block2d_forward(
        x, gamma, beta, run_mean, run_var, conv_w, att_c_w1, att_c_w2, att_s_w)
    out = jax.block_until_ready(out)

    Ho = Wo = (H + 2) // 2
    assert out.shape == (B, Cout, G, Ho, Wo), out.shape

    ref = fa_p4_transition_block2d_reference(
        x, gamma, beta, run_mean, run_var, conv_w, att_c_w1, att_c_w2, att_s_w)
    max_err = float(jnp.max(jnp.abs(out - ref)))
    # bf16 matmul operands (x and the fused conv/pool weight) vs. a pure-f32 reference.
    assert max_err < 3e-2, f"max abs err {max_err}"

    print("KERNEL_OK")
</pallas_src>

<mosaic_0001>
module attributes {stable_mosaic.version = 11 : i64} {
  func.func @kernel(%arg0: i32, %arg1: memref<1x16x256xbf16, #tpu.memory_space<vmem>>, %arg2: memref<2x256xf32, #tpu.memory_space<vmem>>, %arg3: memref<256x8xf32, #tpu.memory_space<vmem>>, %arg4: memref<8x256xf32, #tpu.memory_space<vmem>>, %arg5: memref<256x64xf32, #tpu.memory_space<vmem>>, %arg6: memref<7x64x256xf32, #tpu.memory_space<vmem>>, %arg7: memref<256x288xbf16, #tpu.memory_space<vmem>>, %arg8: memref<1x9x288xf32, #tpu.memory_space<vmem>>) attributes {dimension_semantics = [#tpu.dimension_semantics<parallel>], iteration_bounds = array<i64: 2>, scalar_prefetch = 0 : i64, scratch_operands = 0 : i64, tpu.core_type = #tpu.core_type<tc>, window_params = [{transform_indices = @transform_0, window_bounds = array<i64: 1, 16, 256>}, {pipeline_mode = #tpu.pipeline_mode<synchronous>, transform_indices = @transform_1, window_bounds = array<i64: 2, 256>}, {pipeline_mode = #tpu.pipeline_mode<synchronous>, transform_indices = @transform_2, window_bounds = array<i64: 256, 8>}, {pipeline_mode = #tpu.pipeline_mode<synchronous>, transform_indices = @transform_3, window_bounds = array<i64: 8, 256>}, {pipeline_mode = #tpu.pipeline_mode<synchronous>, transform_indices = @transform_4, window_bounds = array<i64: 256, 64>}, {pipeline_mode = #tpu.pipeline_mode<synchronous>, transform_indices = @transform_5, window_bounds = array<i64: 7, 64, 256>}, {pipeline_mode = #tpu.pipeline_mode<synchronous>, transform_indices = @transform_6, window_bounds = array<i64: 256, 288>}, {transform_indices = @transform_7, window_bounds = array<i64: 1, 9, 288>}]} {
    %c0 = arith.constant 0 : index
    %c0_0 = arith.constant 0 : index
    %c0_1 = arith.constant 0 : index
    %0 = vector.load %arg1[%c0, %c0_0, %c0_1] : memref<1x16x256xbf16, #tpu.memory_space<vmem>>, vector<1x16x256xbf16>
    %1 = arith.extf %0 : vector<1x16x256xbf16> to vector<1x16x256xf32>
    %c0_2 = arith.constant 0 : index
    %c0_3 = arith.constant 0 : index
    %2 = vector.load %arg2[%c0_2, %c0_3] : memref<2x256xf32, #tpu.memory_space<vmem>>, vector<1x256xf32>
    %3 = vector.shape_cast %2 : vector<1x256xf32> to vector<256xf32>
    %4 = vector.shape_cast %3 : vector<256xf32> to vector<1x1x256xf32>
    %5 = vector.broadcast %4 : vector<1x1x256xf32> to vector<1x16x256xf32>
    %6 = arith.mulf %1, %5 : vector<1x16x256xf32>
    %c1 = arith.constant 1 : index
    %c0_4 = arith.constant 0 : index
    %7 = vector.load %arg2[%c1, %c0_4] : memref<2x256xf32, #tpu.memory_space<vmem>>, vector<1x256xf32>
    %8 = vector.shape_cast %7 : vector<1x256xf32> to vector<256xf32>
    %9 = vector.shape_cast %8 : vector<256xf32> to vector<1x1x256xf32>
    %10 = vector.broadcast %9 : vector<1x1x256xf32> to vector<1x16x256xf32>
    %11 = arith.addf %6, %10 : vector<1x16x256xf32>
    %cst = arith.constant 0.000000e+00 : f32
    %12 = vector.broadcast %cst : f32 to vector<1x16x256xf32>
    %13 = arith.maximumf %11, %12 : vector<1x16x256xf32>
    %cst_5 = arith.constant dense<0.000000e+00> : vector<1x256xf32>
    %14 = vector.multi_reduction <add>, %13, %cst_5 [1] : vector<1x16x256xf32> to vector<1x256xf32>
    %c0_6 = arith.constant 0 : index
    %c0_7 = arith.constant 0 : index
    %15 = vector.load %arg3[%c0_6, %c0_7] : memref<256x8xf32, #tpu.memory_space<vmem>>, vector<256x8xf32>
    %cst_8 = arith.constant dense<0.000000e+00> : vector<1x8xf32>
    %16 = tpu.matmul %14, %15, %cst_8 {dimension_numbers = #tpu.dot_dimension_numbers<[1], [0], [0], [1], [0, 0, 1, 1], [], []>} : vector<1x256xf32>, vector<256x8xf32>, vector<1x8xf32> -> vector<1x8xf32>
    %cst_9 = arith.constant 0.000000e+00 : f32
    %17 = vector.broadcast %cst_9 : f32 to vector<1x8xf32>
    %18 = arith.maximumf %16, %17 : vector<1x8xf32>
    %c0_10 = arith.constant 0 : index
    %c0_11 = arith.constant 0 : index
    %19 = vector.load %arg4[%c0_10, %c0_11] : memref<8x256xf32, #tpu.memory_space<vmem>>, vector<8x256xf32>
    %cst_12 = arith.constant dense<0.000000e+00> : vector<1x256xf32>
    %20 = tpu.matmul %18, %19, %cst_12 {dimension_numbers = #tpu.dot_dimension_numbers<[1], [0], [0], [1], [0, 0, 1, 1], [], []>} : vector<1x8xf32>, vector<8x256xf32>, vector<1x256xf32> -> vector<1x256xf32>
    %cst_13 = arith.constant 0.000000e+00 : f32
    %21 = vector.broadcast %cst_13 : f32 to vector<1x256xf32>
    %22 = arith.subf %21, %20 : vector<1x256xf32>
    %23 = math.exp %22 : vector<1x256xf32>
    %cst_14 = arith.constant 1.000000e+00 : f32
    %24 = vector.broadcast %cst_14 : f32 to vector<1x256xf32>
    %25 = arith.addf %24, %23 : vector<1x256xf32>
    %26 = tpu.reciprocal %25 {approx = true} : vector<1x256xf32> -> vector<1x256xf32>
    %27 = vector.shape_cast %13 : vector<1x16x256xf32> to vector<16x256xf32>
    %c0_15 = arith.constant 0 : index
    %c0_16 = arith.constant 0 : index
    %28 = vector.load %arg5[%c0_15, %c0_16] : memref<256x64xf32, #tpu.memory_space<vmem>>, vector<256x64xf32>
    %cst_17 = arith.constant dense<0.000000e+00> : vector<16x64xf32>
    %29 = tpu.matmul %27, %28, %cst_17 {dimension_numbers = #tpu.dot_dimension_numbers<[1], [0], [0], [1], [0, 0, 1, 1], [], []>} : vector<16x256xf32>, vector<256x64xf32>, vector<16x64xf32> -> vector<16x64xf32>
    %30 = vector.shape_cast %29 : vector<16x64xf32> to vector<1x16x64xf32>
    %cst_18 = arith.constant 0.000000e+00 : f32
    %31 = vector.broadcast %cst_18 : f32 to vector<1x3x64xf32>
    %32 = tpu.concatenate %31, %30, %31 in 1 : vector<1x3x64xf32>, vector<1x16x64xf32>, vector<1x3x64xf32> -> vector<1x22x64xf32>
    %33 = vector.extract_strided_slice %32 {offsets = [0, 0, 0], sizes = [1, 16, 64], strides = [1, 1, 1]} : vector<1x22x64xf32> to vector<1x16x64xf32>
    %34 = vector.shape_cast %33 : vector<1x16x64xf32> to vector<16x64xf32>
    %c0_19 = arith.constant 0 : index
    %c0_20 = arith.constant 0 : index
    %c0_21 = arith.constant 0 : index
    %35 = vector.load %arg6[%c0_19, %c0_20, %c0_21] : memref<7x64x256xf32, #tpu.memory_space<vmem>>, vector<1x64x256xf32>
    %36 = vector.shape_cast %35 : vector<1x64x256xf32> to vector<64x256xf32>
    %cst_22 = arith.constant dense<0.000000e+00> : vector<16x256xf32>
    %37 = tpu.matmul %34, %36, %cst_22 {dimension_numbers = #tpu.dot_dimension_numbers<[1], [0], [0], [1], [0, 0, 1, 1], [], []>} : vector<16x64xf32>, vector<64x256xf32>, vector<16x256xf32> -> vector<16x256xf32>
    %38 = vector.extract_strided_slice %32 {offsets = [0, 1, 0], sizes = [1, 16, 64], strides = [1, 1, 1]} : vector<1x22x64xf32> to vector<1x16x64xf32>
    %39 = vector.shape_cast %38 : vector<1x16x64xf32> to vector<16x64xf32>
    %c1_23 = arith.constant 1 : index
    %c0_24 = arith.constant 0 : index
    %c0_25 = arith.constant 0 : index
    %40 = vector.load %arg6[%c1_23, %c0_24, %c0_25] : memref<7x64x256xf32, #tpu.memory_space<vmem>>, vector<1x64x256xf32>
    %41 = vector.shape_cast %40 : vector<1x64x256xf32> to vector<64x256xf32>
    %cst_26 = arith.constant dense<0.000000e+00> : vector<16x256xf32>
    %42 = tpu.matmul %39, %41, %cst_26 {dimension_numbers = #tpu.dot_dimension_numbers<[1], [0], [0], [1], [0, 0, 1, 1], [], []>} : vector<16x64xf32>, vector<64x256xf32>, vector<16x256xf32> -> vector<16x256xf32>
    %43 = arith.addf %37, %42 : vector<16x256xf32>
    %44 = vector.extract_strided_slice %32 {offsets = [0, 2, 0], sizes = [1, 16, 64], strides = [1, 1, 1]} : vector<1x22x64xf32> to vector<1x16x64xf32>
    %45 = vector.shape_cast %44 : vector<1x16x64xf32> to vector<16x64xf32>
    %c2 = arith.constant 2 : index
    %c0_27 = arith.constant 0 : index
    %c0_28 = arith.constant 0 : index
    %46 = vector.load %arg6[%c2, %c0_27, %c0_28] : memref<7x64x256xf32, #tpu.memory_space<vmem>>, vector<1x64x256xf32>
    %47 = vector.shape_cast %46 : vector<1x64x256xf32> to vector<64x256xf32>
    %cst_29 = arith.constant dense<0.000000e+00> : vector<16x256xf32>
    %48 = tpu.matmul %45, %47, %cst_29 {dimension_numbers = #tpu.dot_dimension_numbers<[1], [0], [0], [1], [0, 0, 1, 1], [], []>} : vector<16x64xf32>, vector<64x256xf32>, vector<16x256xf32> -> vector<16x256xf32>
    %49 = arith.addf %43, %48 : vector<16x256xf32>
    %50 = vector.extract_strided_slice %32 {offsets = [0, 3, 0], sizes = [1, 16, 64], strides = [1, 1, 1]} : vector<1x22x64xf32> to vector<1x16x64xf32>
    %51 = vector.shape_cast %50 : vector<1x16x64xf32> to vector<16x64xf32>
    %c3 = arith.constant 3 : index
    %c0_30 = arith.constant 0 : index
    %c0_31 = arith.constant 0 : index
    %52 = vector.load %arg6[%c3, %c0_30, %c0_31] : memref<7x64x256xf32, #tpu.memory_space<vmem>>, vector<1x64x256xf32>
    %53 = vector.shape_cast %52 : vector<1x64x256xf32> to vector<64x256xf32>
    %cst_32 = arith.constant dense<0.000000e+00> : vector<16x256xf32>
    %54 = tpu.matmul %51, %53, %cst_32 {dimension_numbers = #tpu.dot_dimension_numbers<[1], [0], [0], [1], [0, 0, 1, 1], [], []>} : vector<16x64xf32>, vector<64x256xf32>, vector<16x256xf32> -> vector<16x256xf32>
    %55 = arith.addf %49, %54 : vector<16x256xf32>
    %56 = vector.extract_strided_slice %32 {offsets = [0, 4, 0], sizes = [1, 16, 64], strides = [1, 1, 1]} : vector<1x22x64xf32> to vector<1x16x64xf32>
    %57 = vector.shape_cast %56 : vector<1x16x64xf32> to vector<16x64xf32>
    %c4 = arith.constant 4 : index
    %c0_33 = arith.constant 0 : index
    %c0_34 = arith.constant 0 : index
    %58 = vector.load %arg6[%c4, %c0_33, %c0_34] : memref<7x64x256xf32, #tpu.memory_space<vmem>>, vector<1x64x256xf32>
    %59 = vector.shape_cast %58 : vector<1x64x256xf32> to vector<64x256xf32>
    %cst_35 = arith.constant dense<0.000000e+00> : vector<16x256xf32>
    %60 = tpu.matmul %57, %59, %cst_35 {dimension_numbers = #tpu.dot_dimension_numbers<[1], [0], [0], [1], [0, 0, 1, 1], [], []>} : vector<16x64xf32>, vector<64x256xf32>, vector<16x256xf32> -> vector<16x256xf32>
    %61 = arith.addf %55, %60 : vector<16x256xf32>
    %62 = vector.extract_strided_slice %32 {offsets = [0, 5, 0], sizes = [1, 16, 64], strides = [1, 1, 1]} : vector<1x22x64xf32> to vector<1x16x64xf32>
    %63 = vector.shape_cast %62 : vector<1x16x64xf32> to vector<16x64xf32>
    %c5 = arith.constant 5 : index
    %c0_36 = arith.constant 0 : index
    %c0_37 = arith.constant 0 : index
    %64 = vector.load %arg6[%c5, %c0_36, %c0_37] : memref<7x64x256xf32, #tpu.memory_space<vmem>>, vector<1x64x256xf32>
    %65 = vector.shape_cast %64 : vector<1x64x256xf32> to vector<64x256xf32>
    %cst_38 = arith.constant dense<0.000000e+00> : vector<16x256xf32>
    %66 = tpu.matmul %63, %65, %cst_38 {dimension_numbers = #tpu.dot_dimension_numbers<[1], [0], [0], [1], [0, 0, 1, 1], [], []>} : vector<16x64xf32>, vector<64x256xf32>, vector<16x256xf32> -> vector<16x256xf32>
    %67 = arith.addf %61, %66 : vector<16x256xf32>
    %68 = vector.extract_strided_slice %32 {offsets = [0, 6, 0], sizes = [1, 16, 64], strides = [1, 1, 1]} : vector<1x22x64xf32> to vector<1x16x64xf32>
    %69 = vector.shape_cast %68 : vector<1x16x64xf32> to vector<16x64xf32>
    %c6 = arith.constant 6 : index
    %c0_39 = arith.constant 0 : index
    %c0_40 = arith.constant 0 : index
    %70 = vector.load %arg6[%c6, %c0_39, %c0_40] : memref<7x64x256xf32, #tpu.memory_space<vmem>>, vector<1x64x256xf32>
    %71 = vector.shape_cast %70 : vector<1x64x256xf32> to vector<64x256xf32>
    %cst_41 = arith.constant dense<0.000000e+00> : vector<16x256xf32>
    %72 = tpu.matmul %69, %71, %cst_41 {dimension_numbers = #tpu.dot_dimension_numbers<[1], [0], [0], [1], [0, 0, 1, 1], [], []>} : vector<16x64xf32>, vector<64x256xf32>, vector<16x256xf32> -> vector<16x256xf32>
    %73 = arith.addf %67, %72 : vector<16x256xf32>
    %cst_42 = arith.constant 0.000000e+00 : f32
    %74 = vector.broadcast %cst_42 : f32 to vector<16x256xf32>
    %75 = arith.subf %74, %73 : vector<16x256xf32>
    %76 = math.exp %75 : vector<16x256xf32>
    %cst_43 = arith.constant 1.000000e+00 : f32
    %77 = vector.broadcast %cst_43 : f32 to vector<16x256xf32>
    %78 = arith.addf %77, %76 : vector<16x256xf32>
    %79 = tpu.reciprocal %78 {approx = true} : vector<16x256xf32> -> vector<16x256xf32>
    %80 = vector.shape_cast %79 : vector<16x256xf32> to vector<1x16x256xf32>
    %81 = vector.shape_cast %26 : vector<1x256xf32> to vector<1x1x256xf32>
    %82 = vector.broadcast %81 : vector<1x1x256xf32> to vector<1x16x256xf32>
    %83 = arith.mulf %13, %82 : vector<1x16x256xf32>
    %84 = arith.mulf %83, %80 : vector<1x16x256xf32>
    %85 = vector.extract_strided_slice %84 {offsets = [0, 0, 0], sizes = [1, 1, 256], strides = [1, 1, 1]} : vector<1x16x256xf32> to vector<1x1x256xf32>
    %86 = vector.extract_strided_slice %84 {offsets = [0, 1, 0], sizes = [1, 14, 256], strides = [1, 1, 1]} : vector<1x16x256xf32> to vector<1x14x256xf32>
    %87 = vector.shape_cast %86 : vector<1x14x256xf32> to vector<1x7x2x256xf32>
    %88 = vector.extract_strided_slice %87 {offsets = [0, 0, 0, 0], sizes = [1, 7, 1, 256], strides = [1, 1, 1, 1]} : vector<1x7x2x256xf32> to vector<1x7x1x256xf32>
    %89 = vector.shape_cast %88 : vector<1x7x1x256xf32> to vector<1x7x256xf32>
    %90 = vector.extract_strided_slice %87 {offsets = [0, 0, 1, 0], sizes = [1, 7, 1, 256], strides = [1, 1, 1, 1]} : vector<1x7x2x256xf32> to vector<1x7x1x256xf32>
    %91 = vector.shape_cast %90 : vector<1x7x1x256xf32> to vector<1x7x256xf32>
    %92 = arith.addf %89, %91 : vector<1x7x256xf32>
    %93 = vector.extract_strided_slice %84 {offsets = [0, 15, 0], sizes = [1, 1, 256], strides = [1, 1, 1]} : vector<1x16x256xf32> to vector<1x1x256xf32>
    %94 = tpu.concatenate %85, %92, %93 in 1 : vector<1x1x256xf32>, vector<1x7x256xf32>, vector<1x1x256xf32> -> vector<1x9x256xf32>
    %95 = vector.shape_cast %94 : vector<1x9x256xf32> to vector<9x256xf32>
    %96 = arith.truncf %95 : vector<9x256xf32> to vector<9x256xbf16>
    %c0_44 = arith.constant 0 : index
    %c0_45 = arith.constant 0 : index
    %97 = vector.load %arg7[%c0_44, %c0_45] : memref<256x288xbf16, #tpu.memory_space<vmem>>, vector<256x288xbf16>
    %cst_46 = arith.constant dense<0.000000e+00> : vector<9x288xf32>
    %98 = tpu.matmul %96, %97, %cst_46 {dimension_numbers = #tpu.dot_dimension_numbers<[1], [0], [0], [1], [0, 0, 1, 1], [], []>} : vector<9x256xbf16>, vector<256x288xbf16>, vector<9x288xf32> -> vector<9x288xf32>
    %99 = vector.shape_cast %98 : vector<9x288xf32> to vector<1x9x288xf32>
    %c0_47 = arith.constant 0 : index
    %c0_48 = arith.constant 0 : index
    %c0_49 = arith.constant 0 : index
    %100 = vector.load %arg8[%c0_47, %c0_48, %c0_49] : memref<1x9x288xf32, #tpu.memory_space<vmem>>, vector<1x9x288xf32>
    tpu.vector_store %arg8[%c0_47, %c0_48, %c0_49], %99 {strides = array<i32>} : memref<1x9x288xf32, #tpu.memory_space<vmem>>, vector<1x9x288xf32>,
    return
  }
  func.func @transform_0(%arg0: i32) -> (i32, i32, i32) {
    %c0_i32 = arith.constant 0 : i32
    %c0_i32_0 = arith.constant 0 : i32
    %c0_i32_1 = arith.constant 0 : i32
    return %arg0, %c0_i32, %c0_i32_0 : i32, i32, i32
  }
  func.func @transform_1(%arg0: i32) -> (i32, i32) {
    %c0_i32 = arith.constant 0 : i32
    %c0_i32_0 = arith.constant 0 : i32
    %c0_i32_1 = arith.constant 0 : i32
    return %c0_i32, %c0_i32_0 : i32, i32
  }
  func.func @transform_2(%arg0: i32) -> (i32, i32) {
    %c0_i32 = arith.constant 0 : i32
    %c0_i32_0 = arith.constant 0 : i32
    %c0_i32_1 = arith.constant 0 : i32
    return %c0_i32, %c0_i32_0 : i32, i32
  }
  func.func @transform_3(%arg0: i32) -> (i32, i32) {
    %c0_i32 = arith.constant 0 : i32
    %c0_i32_0 = arith.constant 0 : i32
    %c0_i32_1 = arith.constant 0 : i32
    return %c0_i32, %c0_i32_0 : i32, i32
  }
  func.func @transform_4(%arg0: i32) -> (i32, i32) {
    %c0_i32 = arith.constant 0 : i32
    %c0_i32_0 = arith.constant 0 : i32
    %c0_i32_1 = arith.constant 0 : i32
    return %c0_i32, %c0_i32_0 : i32, i32
  }
  func.func @transform_5(%arg0: i32) -> (i32, i32, i32) {
    %c0_i32 = arith.constant 0 : i32
    %c0_i32_0 = arith.constant 0 : i32
    %c0_i32_1 = arith.constant 0 : i32
    %c0_i32_2 = arith.constant 0 : i32
    return %c0_i32, %c0_i32_0, %c0_i32_1 : i32, i32, i32
  }
  func.func @transform_6(%arg0: i32) -> (i32, i32) {
    %c0_i32 = arith.constant 0 : i32
    %c0_i32_0 = arith.constant 0 : i32
    %c0_i32_1 = arith.constant 0 : i32
    return %c0_i32, %c0_i32_0 : i32, i32
  }
  func.func @transform_7(%arg0: i32) -> (i32, i32, i32) {
    %c0_i32 = arith.constant 0 : i32
    %c0_i32_0 = arith.constant 0 : i32
    %c0_i32_1 = arith.constant 0 : i32
    return %arg0, %c0_i32, %c0_i32_0 : i32, i32, i32
  }
}

</mosaic_0001>

<llo_original>
// kernel: tpu_custom_call.1
$region0: #{tpu_custom_call.1}
  #allocation0 [shape = 'u32[]', space=smem, size = 0x4, offset = 0x4, fixed_abs, tag = 'smem constant byte address 0x4 - core index']
  #allocation1 [shape = 'u32[144,128]{1,0:T(1,128)}', space=vmem, size = 0x12000, scoped, tag = 'internal scratch']
  %s0 = inlined_call_operand.vmem [shape: bf16[2,16,256], index: 0, kind: input, shape index: {}]
  %s1 = inlined_call_operand.vmem [shape: f32[2,256], index: 1, kind: input, shape index: {}]
  %s2 = inlined_call_operand.vmem [shape: f32[256,8], index: 2, kind: input, shape index: {}]
  %s3 = inlined_call_operand.vmem [shape: f32[8,256], index: 3, kind: input, shape index: {}]
  %s4 = inlined_call_operand.vmem [shape: f32[256,64], index: 4, kind: input, shape index: {}]
  %s5 = inlined_call_operand.vmem [shape: f32[7,64,256], index: 5, kind: input, shape index: {}]
  %s6 = inlined_call_operand.vmem [shape: bf16[256,288], index: 6, kind: input, shape index: {}]
  %s7 = inlined_call_operand.vmem [shape: f32[2,9,288], index: 7, kind: output, shape index: {}]
  %s8 = sld [smem:[#allocation0]]
  $region61: #{tpu_custom_call.1} parent=0
    _
  %s10 = ssub.s32 1, %s8
  %s11 = scalar_select 0, %s10, %s8
  loop: start=0, step=1, limit=4
  $region2: #{tpu_custom_call.1} parent=0 // loop_pre_header
    _
  $region3: #{tpu_custom_call.1} parent=0 // loop_header
    %s13 = sphi 0, %s17
    %p14 = scmp.ge.s32.totalorder %s13, 4
    %s23 = sphi 0, %s25
    %s26 = sphi 0, %s23
    %s27 = sphi 0, %s26
    %s43 = sphi 0, %s27
    %s47 = sphi 0, %s47
    %s49 = sphi 0, %s47
    %s50 = sphi 0, %s49
    %s64 = sphi 0, %s50
    %s68 = sphi 0, %s68
    %s70 = sphi 0, %s68
    %s71 = sphi 0, %s70
    %s85 = sphi 0, %s71
    %s89 = sphi 0, %s89
    %s91 = sphi 0, %s89
    %s92 = sphi 0, %s91
    %s106 = sphi 0, %s92
    %s110 = sphi 0, %s110
    %s112 = sphi 0, %s110
    %s113 = sphi 0, %s112
    %s127 = sphi 0, %s113
    %s131 = sphi 0, %s131
    %s133 = sphi 0, %s131
    %s134 = sphi 0, %s133
    %s148 = sphi 0, %s134
    %s152 = sphi 0, %s152
    %s154 = sphi 0, %s152
    %s155 = sphi 0, %s154
    %s169 = sphi 0, %s155
    %s175 = sphi 0, %s177
    %s178 = sphi 0, %s175
    %s179 = sphi 0, %s178
    %s195 = sphi 0, %s179
  $region4: #{tpu_custom_call.1} parent=0 // loop_header_branch
    %16 = sbr.rel (%p14) target = $region8
  $region5: #{tpu_custom_call.1} parent=0 // loop_body
    %s18 = ssub.s32 %s13, 1
    %s19 = ssub.s32 %s13, 2
    %s20 = sadd.s32 %s13, 1
    %s21 = ssub.s32 %s13, %s20
    %p22 = scmp.eq.s32.totalorder %s21, 0
    %s24 = sadd.s32 %s23, 1
    %s25 = scalar_select %p22, %s23, %s24
    %p28 = pneg %p22
    %p29 = scmp.eq.s32.totalorder %s13, 1
    %p30 = por %p28, %p29
    %p31 = scmp.ne.s32.totalorder %s23, %s26
    %p32 = scmp.eq.s32.totalorder %s13, 0
    %p33 = por %p31, %p32
    %p34 = scmp.ne.s32.totalorder %s23, %s26
    %p35 = scmp.eq.s32.totalorder %s18, 1
    %p36 = por %p34, %p35
    %p37 = scmp.ne.s32.totalorder %s26, %s27
    %p38 = scmp.eq.s32.totalorder %s18, 0
    %p39 = por %p37, %p38
    %p40 = scmp.ne.s32.totalorder %s26, %s27
    %p41 = scmp.eq.s32.totalorder %s19, 1
    %p42 = por %p40, %p41
    %p44 = scmp.ne.s32.totalorder %s27, %s43
    %p45 = scmp.eq.s32.totalorder %s19, 0
    %p46 = por %p44, %p45
    %s48 = sadd.s32 %s47, 1
    %p51 = scmp.eq.s32.totalorder %s13, 1
    %p52 = scmp.ne.s32.totalorder %s47, %s49
    %p53 = scmp.eq.s32.totalorder %s13, 0
    %p54 = por %p52, %p53
    %p55 = scmp.ne.s32.totalorder %s47, %s49
    %p56 = scmp.eq.s32.totalorder %s18, 1
    %p57 = por %p55, %p56
    %p58 = scmp.ne.s32.totalorder %s49, %s50
    %p59 = scmp.eq.s32.totalorder %s18, 0
    %p60 = por %p58, %p59
    %p61 = scmp.ne.s32.totalorder %s49, %s50
    %p62 = scmp.eq.s32.totalorder %s19, 1
    %p63 = por %p61, %p62
    %p65 = scmp.ne.s32.totalorder %s50, %s64
    %p66 = scmp.eq.s32.totalorder %s19, 0
    %p67 = por %p65, %p66
    %s69 = sadd.s32 %s68, 1
    %p72 = scmp.eq.s32.totalorder %s13, 1
    %p73 = scmp.ne.s32.totalorder %s68, %s70
    %p74 = scmp.eq.s32.totalorder %s13, 0
    %p75 = por %p73, %p74
    %p76 = scmp.ne.s32.totalorder %s68, %s70
    %p77 = scmp.eq.s32.totalorder %s18, 1
    %p78 = por %p76, %p77
    %p79 = scmp.ne.s32.totalorder %s70, %s71
    %p80 = scmp.eq.s32.totalorder %s18, 0
    %p81 = por %p79, %p80
    %p82 = scmp.ne.s32.totalorder %s70, %s71
    %p83 = scmp.eq.s32.totalorder %s19, 1
    %p84 = por %p82, %p83
    %p86 = scmp.ne.s32.totalorder %s71, %s85
    %p87 = scmp.eq.s32.totalorder %s19, 0
    %p88 = por %p86, %p87
    %s90 = sadd.s32 %s89, 1
    %p93 = scmp.eq.s32.totalorder %s13, 1
    %p94 = scmp.ne.s32.totalorder %s89, %s91
    %p95 = scmp.eq.s32.totalorder %s13, 0
    %p96 = por %p94, %p95
    %p97 = scmp.ne.s32.totalorder %s89, %s91
    %p98 = scmp.eq.s32.totalorder %s18, 1
    %p99 = por %p97, %p98
    %p100 = scmp.ne.s32.totalorder %s91, %s92
    %p101 = scmp.eq.s32.totalorder %s18, 0
    %p102 = por %p100, %p101
    %p103 = scmp.ne.s32.totalorder %s91, %s92
    %p104 = scmp.eq.s32.totalorder %s19, 1
    %p105 = por %p103, %p104
    %p107 = scmp.ne.s32.totalorder %s92, %s106
    %p108 = scmp.eq.s32.totalorder %s19, 0
    %p109 = por %p107, %p108
    %s111 = sadd.s32 %s110, 1
    %p114 = scmp.eq.s32.totalorder %s13, 1
    %p115 = scmp.ne.s32.totalorder %s110, %s112
    %p116 = scmp.eq.s32.totalorder %s13, 0
    %p117 = por %p115, %p116
    %p118 = scmp.ne.s32.totalorder %s110, %s112
    %p119 = scmp.eq.s32.totalorder %s18, 1
    %p120 = por %p118, %p119
    %p121 = scmp.ne.s32.totalorder %s112, %s113
    %p122 = scmp.eq.s32.totalorder %s18, 0
    %p123 = por %p121, %p122
    %p124 = scmp.ne.s32.totalorder %s112, %s113
    %p125 = scmp.eq.s32.totalorder %s19, 1
    %p126 = por %p124, %p125
    %p128 = scmp.ne.s32.totalorder %s113, %s127
    %p129 = scmp.eq.s32.totalorder %s19, 0
    %p130 = por %p128, %p129
    %s132 = sadd.s32 %s131, 1
    %p135 = scmp.eq.s32.totalorder %s13, 1
    %p136 = scmp.ne.s32.totalorder %s131, %s133
    %p137 = scmp.eq.s32.totalorder %s13, 0
    %p138 = por %p136, %p137
    %p139 = scmp.ne.s32.totalorder %s131, %s133
    %p140 = scmp.eq.s32.totalorder %s18, 1
    %p141 = por %p139, %p140
    %p142 = scmp.ne.s32.totalorder %s133, %s134
    %p143 = scmp.eq.s32.totalorder %s18, 0
    %p144 = por %p142, %p143
    %p145 = scmp.ne.s32.totalorder %s133, %s134
    %p146 = scmp.eq.s32.totalorder %s19, 1
    %p147 = por %p145, %p146
    %p149 = scmp.ne.s32.totalorder %s134, %s148
    %p150 = scmp.eq.s32.totalorder %s19, 0
    %p151 = por %p149, %p150
    %s153 = sadd.s32 %s152, 1
    %p156 = scmp.eq.s32.totalorder %s13, 1
    %p157 = scmp.ne.s32.totalorder %s152, %s154
    %p158 = scmp.eq.s32.totalorder %s13, 0
    %p159 = por %p157, %p158
    %p160 = scmp.ne.s32.totalorder %s152, %s154
    %p161 = scmp.eq.s32.totalorder %s18, 1
    %p162 = por %p160, %p161
    %p163 = scmp.ne.s32.totalorder %s154, %s155
    %p164 = scmp.eq.s32.totalorder %s18, 0
    %p165 = por %p163, %p164
    %p166 = scmp.ne.s32.totalorder %s154, %s155
    %p167 = scmp.eq.s32.totalorder %s19, 1
    %p168 = por %p166, %p167
    %p170 = scmp.ne.s32.totalorder %s155, %s169
    %p171 = scmp.eq.s32.totalorder %s19, 0
    %p172 = por %p170, %p171
    %s173 = ssub.s32 %s13, %s20
    %p174 = scmp.eq.s32.totalorder %s173, 0
    %s176 = sadd.s32 %s175, 1
    %s177 = scalar_select %p174, %s175, %s176
    %p180 = pneg %p174
    %p181 = scmp.eq.s32.totalorder %s13, 1
    %p182 = por %p180, %p181
    %p183 = scmp.ne.s32.totalorder %s175, %s178
    %p184 = scmp.eq.s32.totalorder %s13, 0
    %p185 = por %p183, %p184
    %p186 = scmp.ne.s32.totalorder %s175, %s178
    %p187 = scmp.eq.s32.totalorder %s18, 1
    %p188 = por %p186, %p187
    %p189 = scmp.ne.s32.totalorder %s178, %s179
    %p190 = scmp.eq.s32.totalorder %s18, 0
    %p191 = por %p189, %p190
    %p192 = scmp.ne.s32.totalorder %s178, %s179
    %p193 = scmp.eq.s32.totalorder %s19, 1
    %p194 = por %p192, %p193
    %p196 = scmp.ne.s32.totalorder %s179, %s195
    %p197 = scmp.eq.s32.totalorder %s19, 0
    %p198 = por %p196, %p197
    %p199 = scmp.le.s32.totalorder 1, %s13
    %p200 = scmp.lt.s32.totalorder %s13, 3
    %p201 = pnand %p199, %p200
    %p202 = pneg %p201
    // Predicated region
    $region9: #{tpu_custom_call.1} parent=5 // pred_check
      _
    $region10: #{tpu_custom_call.1} parent=5 // pred_check_branch
      %204 = sbr.rel (%p201) target = $region12
    $region11: #{tpu_custom_call.1} parent=5 // pred_region
      %s205 = ssub.s32 %s13, 1
      // Predicated region
      $region13: #{tpu_custom_call.1} parent=11 // pred_check
        %p206 = pneg %p60
      $region14: #{tpu_custom_call.1} parent=11 // pred_check_branch
        %208 = sbr.rel (%p206) target = $region16
      $region15: #{tpu_custom_call.1} parent=11 // pred_region
        _
      $region16: #{tpu_custom_call.1} parent=11 // pred_fallthru
        _
      // Predicated region
      $region17: #{tpu_custom_call.1} parent=11 // pred_check
        %p209 = pneg %p81
      $region18: #{tpu_custom_call.1} parent=11 // pred_check_branch
        %211 = sbr.rel (%p209) target = $region20
      $region19: #{tpu_custom_call.1} parent=11 // pred_region
        _
      $region20: #{tpu_custom_call.1} parent=11 // pred_fallthru
        _
      // Predicated region
      $region21: #{tpu_custom_call.1} parent=11 // pred_check
        %p212 = pneg %p102
      $region22: #{tpu_custom_call.1} parent=11 // pred_check_branch
        %214 = sbr.rel (%p212) target = $region24
      $region23: #{tpu_custom_call.1} parent=11 // pred_region
        _
      $region24: #{tpu_custom_call.1} parent=11 // pred_fallthru
        _
      // Predicated region
      $region25: #{tpu_custom_call.1} parent=11 // pred_check
        %p215 = pneg %p123
      $region26: #{tpu_custom_call.1} parent=11 // pred_check_branch
        %217 = sbr.rel (%p215) target = $region28
      $region27: #{tpu_custom_call.1} parent=11 // pred_region
        _
      $region28: #{tpu_custom_call.1} parent=11 // pred_fallthru
        _
      // Predicated region
      $region29: #{tpu_custom_call.1} parent=11 // pred_check
        %p218 = pneg %p144
      $region30: #{tpu_custom_call.1} parent=11 // pred_check_branch
        %220 = sbr.rel (%p218) target = $region32
      $region31: #{tpu_custom_call.1} parent=11 // pred_region
        _
      $region32: #{tpu_custom_call.1} parent=11 // pred_fallthru
        _
      // Predicated region
      $region33: #{tpu_custom_call.1} parent=11 // pred_check
        %p221 = pneg %p165
      $region34: #{tpu_custom_call.1} parent=11 // pred_check_branch
        %223 = sbr.rel (%p221) target = $region36
      $region35: #{tpu_custom_call.1} parent=11 // pred_region
        _
      $region36: #{tpu_custom_call.1} parent=11 // pred_fallthru
        _
    $region12: #{tpu_custom_call.1} parent=5 // pred_fallthru
      _
    %p224 = scmp.lt.s32.totalorder %s13, 2
    // Predicated region
    $region37: #{tpu_custom_call.1} parent=5 // pred_check
      %p225 = pneg %p224
    $region38: #{tpu_custom_call.1} parent=5 // pred_check_branch
      %227 = sbr.rel (%p225) target = $region40
    $region39: #{tpu_custom_call.1} parent=5 // pred_region
      // Predicated region
      $region41: #{tpu_custom_call.1} parent=39 // pred_check
        %p228 = pneg %p33
      $region42: #{tpu_custom_call.1} parent=39 // pred_check_branch
        %230 = sbr.rel (%p228) target = $region44
      $region43: #{tpu_custom_call.1} parent=39 // pred_region
        %p231 = scmp.lt.s32.totalorder %s13, 1
        %s232 = scalar_select %p231, %s13, 1
        %s233 = smul.addr %s232, 4
        %s234 = smul.addr %s233, 4
        %s235 = scalar_lea.vmem %s0, %s234
      $region44: #{tpu_custom_call.1} parent=39 // pred_fallthru
        _
    $region40: #{tpu_custom_call.1} parent=5 // pred_fallthru
      _
    %p236 = scmp.le.s32.totalorder 1, %s13
    %p237 = scmp.lt.s32.totalorder %s13, 3
    %p238 = pnand %p236, %p237
    %p239 = pneg %p238
    // Predicated region
    $region45: #{tpu_custom_call.1} parent=5 // pred_check
      _
    $region46: #{tpu_custom_call.1} parent=5 // pred_check_branch
      %241 = sbr.rel (%p238) target = $region48
    $region47: #{tpu_custom_call.1} parent=5 // pred_region
      %s242 = ssub.s32 %s13, 1
      %p243 = scmp.lt.s32.totalorder %s18, 1
      %s244 = scalar_select %p243, %s18, 1
      %s245 = smul.addr %s244, 4
      %s246 = smul.addr %s245, 4
      %s247 = scalar_lea.vmem %s0, %s246
      %p248 = pneg %p39
      %p249 = pneg %p36
      %p250 = pneg %p60
      %p251 = pneg %p57
      %p252 = pneg %p81
      %p253 = pneg %p78
      %p254 = pneg %p102
      %p255 = pneg %p99
      %p256 = pneg %p123
      %p257 = pneg %p120
      %p258 = pneg %p144
      %p259 = pneg %p141
      %p260 = pneg %p165
      %p261 = pneg %p162
      %p262 = pneg %p191
      %p263 = pneg %p188
      %p264 = scmp.lt.s32.totalorder %s18, 1
      %s265 = scalar_select %p264, %s18, 1
      %s266 = smul.addr %s265, 6
      %s267 = smul.addr %s266, 8
      %s268 = scalar_lea.vmem %s7, %s267
      %p269 = scmp.lt.s32.totalorder %s18, 1
      %s270 = scalar_select %p269, %s18, 1
      %s271 = smul.addr %s270, 4
      %s272 = smul.addr %s271, 4
      %s273 = scalar_lea.vmem %s0, %s272
      %p274 = scmp.lt.s32.totalorder %s18, 1
      %s275 = scalar_select %p274, %s18, 1
      %s276 = smul.addr %s275, 6
      %s277 = smul.addr %s276, 8
      %s278 = scalar_lea.vmem %s7, %s277
      %v280 = vld [vmem:[%s273] sm:$0xff]
      %v281 = vld [vmem:[%s273 + $0x8] sm:$0xff]
      %v282 = vunpack.c.l.bf16 %v280
      %v283 = vunpack.c.h.bf16 %v280
      %v284 = vunpack.c.l.bf16 %v281
      %v285 = vunpack.c.h.bf16 %v281
      %v286 = vld [vmem:[%s1] ss:$2 sm:$0x3]
      %v288 = vlaneseq
      %v289 = vshrl.u32 %v288, 7
      %v290 = vsub.s32 0, %v289
      %v291 = vrot.slane %v286, %v290
      %v292 = vlaneseq
      %v293 = vshrl.u32 %v292, 7
      %v294 = vsub.s32 1, %v293
      %v295 = vrot.slane %v286, %v294
      %v298 = vmul.f32 %v282, %v291
      %v299 = vmul.f32 %v283, %v295
      %v300 = vmul.f32 %v284, %v291
      %v301 = vmul.f32 %v285, %v295
      %s302 = scalar_lea.vmem %s1, 1
      %v303 = vld [vmem:[%s302] ss:$2 sm:$0x3]
      %v305 = vlaneseq
      %v306 = vshrl.u32 %v305, 7
      %v307 = vsub.s32 0, %v306
      %v308 = vrot.slane %v303, %v307
      %v309 = vlaneseq
      %v310 = vshrl.u32 %v309, 7
      %v311 = vsub.s32 1, %v310
      %v312 = vrot.slane %v303, %v311
      %v315 = vadd.f32 %v298, %v308
      %v316 = vadd.f32 %v299, %v312
      %v317 = vadd.f32 %v300, %v308
      %v318 = vadd.f32 %v301, %v312
      %v319 = vmax.f32 %v315, 0.0
      %v320 = vmax.f32 %v316, 0.0
      %v321 = vmax.f32 %v317, 0.0
      %v322 = vmax.f32 %v318, 0.0
      %v323 = vadd.f32 %v319, %v321
      %v324 = vrot.slane %v323, 4
      %v325 = vadd.f32 %v323, %v324
      %v326 = vrot.slane %v325, 2
      %v327 = vadd.f32 %v325, %v326
      %v328 = vrot.slane %v327, 1
      %v329 = vadd.f32 %v327, %v328
      %v330 = vadd.f32 %v320, %v322
      %v331 = vrot.slane %v330, 4
      %v332 = vadd.f32 %v330, %v331
      %v333 = vrot.slane %v332, 2
      %v334 = vadd.f32 %v332, %v333
      %v335 = vrot.slane %v334, 1
      %v336 = vadd.f32 %v334, %v335
      %v337 = vld [vmem:[%s2] sm:$0xff]
      %v338 = vld [vmem:[%s2 + $0x8] sm:$0xff]
      %v339 = vld [vmem:[%s2 + $0x10] sm:$0xff]
      %v340 = vld [vmem:[%s2 + $0x18] sm:$0xff]
      %v341 = vld [vmem:[%s2 + $0x20] sm:$0xff]
      %v342 = vld [vmem:[%s2 + $0x28] sm:$0xff]
      %v343 = vld [vmem:[%s2 + $0x30] sm:$0xff]
      %v344 = vld [vmem:[%s2 + $0x38] sm:$0xff]
      %v345 = vld [vmem:[%s2 + $0x40] sm:$0xff]
      %v346 = vld [vmem:[%s2 + $0x48] sm:$0xff]
      %v347 = vld [vmem:[%s2 + $0x50] sm:$0xff]
      %v348 = vld [vmem:[%s2 + $0x58] sm:$0xff]
      %v349 = vld [vmem:[%s2 + $0x60] sm:$0xff]
      %v350 = vld [vmem:[%s2 + $0x68] sm:$0xff]
      %v351 = vld [vmem:[%s2 + $0x70] sm:$0xff]
      %v352 = vld [vmem:[%s2 + $0x78] sm:$0xff]
      %v353 = vld [vmem:[%s2 + $0x80] sm:$0xff]
      %v354 = vld [vmem:[%s2 + $0x88] sm:$0xff]
      %v355 = vld [vmem:[%s2 + $0x90] sm:$0xff]
      %v356 = vld [vmem:[%s2 + $0x98] sm:$0xff]
      %v357 = vld [vmem:[%s2 + $0xa0] sm:$0xff]
      %v358 = vld [vmem:[%s2 + $0xa8] sm:$0xff]
      %v359 = vld [vmem:[%s2 + $0xb0] sm:$0xff]
      %v360 = vld [vmem:[%s2 + $0xb8] sm:$0xff]
      %v361 = vld [vmem:[%s2 + $0xc0] sm:$0xff]
      %v362 = vld [vmem:[%s2 + $0xc8] sm:$0xff]
      %v363 = vld [vmem:[%s2 + $0xd0] sm:$0xff]
      %v364 = vld [vmem:[%s2 + $0xd8] sm:$0xff]
      %v365 = vld [vmem:[%s2 + $0xe0] sm:$0xff]
      %v366 = vld [vmem:[%s2 + $0xe8] sm:$0xff]
      %v367 = vld [vmem:[%s2 + $0xf0] sm:$0xff]
      %v368 = vld [vmem:[%s2 + $0xf8] sm:$0xff]
      %369 = vmatprep.subr.mxu0 0.0
      %370 = vmatpush1.msra.mxu0 %v337
      %371 = vmatprep.subr.mxu0 0.0
      %372 = vmatpush1.msra.mxu0 %v338
      %373 = vmatprep.subr.mxu0 0.0
      %374 = vmatpush1.msra.mxu0 %v339
      %375 = vmatprep.subr.mxu0 0.0
      %376 = vmatpush1.msra.mxu0 %v340
      %377 = vmatprep.subr.mxu0 0.0
      %378 = vmatpush1.msra.mxu0 %v341
      %379 = vmatprep.subr.mxu0 0.0
      %380 = vmatpush1.msra.mxu0 %v342
      %381 = vmatprep.subr.mxu0 0.0
      %382 = vmatpush1.msra.mxu0 %v343
      %383 = vmatprep.subr.mxu0 0.0
      %384 = vmatpush1.msra.mxu0 %v344
      %385 = vmatprep.subr.mxu0 0.0
      %386 = vmatpush1.msra.mxu0 %v345
      %387 = vmatprep.subr.mxu0 0.0
      %388 = vmatpush1.msra.mxu0 %v346
      %389 = vmatprep.subr.mxu0 0.0
      %390 = vmatpush1.msra.mxu0 %v347
      %391 = vmatprep.subr.mxu0 0.0
      %392 = vmatpush1.msra.mxu0 %v348
      %393 = vmatprep.subr.mxu0 0.0
      %394 = vmatpush1.msra.mxu0 %v349
      %395 = vmatprep.subr.mxu0 0.0
      %396 = vmatpush1.msra.mxu0 %v350
      %397 = vmatprep.subr.mxu0 0.0
      %398 = vmatpush1.msra.mxu0 %v351
      %399 = vmatprep.subr.mxu0 0.0
      %400 = vmatpush1.msra.mxu0 %v352
      %401 = vmatprep.subr.mxu0 0.0
      %402 = vmatpush1.msra.mxu0 %v353
      %403 = vmatprep.subr.mxu0 0.0
      %404 = vmatpush1.msra.mxu0 %v354
      %405 = vmatprep.subr.mxu0 0.0
      %406 = vmatpush1.msra.mxu0 %v355
      %407 = vmatprep.subr.mxu0 0.0
      %408 = vmatpush1.msra.mxu0 %v356
      %409 = vmatprep.subr.mxu0 0.0
      %410 = vmatpush1.msra.mxu0 %v357
      %411 = vmatprep.subr.mxu0 0.0
      %412 = vmatpush1.msra.mxu0 %v358
      %413 = vmatprep.subr.mxu0 0.0
      %414 = vmatpush1.msra.mxu0 %v359
      %415 = vmatprep.subr.mxu0 0.0
      %416 = vmatpush1.msra.mxu0 %v360
      %417 = vmatprep.subr.mxu0 0.0
      %418 = vmatpush1.msra.mxu0 %v361
      %419 = vmatprep.subr.mxu0 0.0
      %420 = vmatpush1.msra.mxu0 %v362
      %421 = vmatprep.subr.mxu0 0.0
      %422 = vmatpush1.msra.mxu0 %v363
      %423 = vmatprep.subr.mxu0 0.0
      %424 = vmatpush1.msra.mxu0 %v364
      %425 = vmatprep.subr.mxu0 0.0
      %426 = vmatpush1.msra.mxu0 %v365
      %427 = vmatprep.subr.mxu0 0.0
      %428 = vmatpush1.msra.mxu0 %v366
      %429 = vmatprep.subr.mxu0 0.0
      %430 = vmatpush1.msra.mxu0 %v367
      %431 = vmatprep.subr.mxu0 0.0
      %432 = vmatpush1.msra.mxu0 %v368
      %433 = vmatprep.mubr.f32.mxu0 %v336
      %434 = vmatmul.mubr.f32.gmra.mrb[0].mxu0 %v329
      %v435 = vpop.f32.mrb[0].mxu0
      %v436 = vadd.f32 0.0, %v435
      %v437 = vpop.f32.mrb[0].mxu0
      %438 = vdwg.mxu0
      %v439 = vmax.f32 %v436, 0.0
      %v440 = vld [vmem:[%s3] sm:$0xff]
      %v441 = vld [vmem:[%s3 + $0x8] sm:$0xff]
      %vm442 = vcmask 64512
      %v444 = vsel %vm442, %v439, 0
      %446 = vmatprep.subr.mxu0 %v441
      %447 = vmatpush1.msra.mxu0 %v440
      %448 = vmatprep.subr.mxu0 0.0
      %449 = vmatpush1.msra.mxu0 0.0
      %450 = vmatprep.subr.mxu0 0.0
      %451 = vmatpush1.msra.mxu0 0.0
      %452 = vmatprep.subr.mxu0 0.0
      %453 = vmatpush1.msra.mxu0 0.0
      %454 = vmatprep.subr.mxu0 0.0
      %455 = vmatpush1.msra.mxu0 0.0
      %456 = vmatprep.subr.mxu0 0.0
      %457 = vmatpush1.msra.mxu0 0.0
      %458 = vmatprep.subr.mxu0 0.0
      %459 = vmatpush1.msra.mxu0 0.0
      %460 = vmatprep.subr.mxu0 0.0
      %461 = vmatpush1.msra.mxu0 0.0
      %462 = vmatprep.subr.mxu0 0.0
      %463 = vmatpush1.msra.mxu0 0.0
      %464 = vmatprep.subr.mxu0 0.0
      %465 = vmatpush1.msra.mxu0 0.0
      %466 = vmatprep.subr.mxu0 0.0
      %467 = vmatpush1.msra.mxu0 0.0
      %468 = vmatprep.subr.mxu0 0.0
      %469 = vmatpush1.msra.mxu0 0.0
      %470 = vmatprep.subr.mxu0 0.0
      %471 = vmatpush1.msra.mxu0 0.0
      %472 = vmatprep.subr.mxu0 0.0
      %473 = vmatpush1.msra.mxu0 0.0
      %474 = vmatprep.subr.mxu0 0.0
      %475 = vmatpush1.msra.mxu0 0.0
      %476 = vmatprep.subr.mxu0 0.0
      %477 = vmatpush1.msra.mxu0 0.0
      %478 = vmatprep.subr.mxu0 0.0
      %479 = vmatpush1.msra.mxu0 0.0
      %480 = vmatprep.subr.mxu0 0.0
      %481 = vmatpush1.msra.mxu0 0.0
      %482 = vmatprep.subr.mxu0 0.0
      %483 = vmatpush1.msra.mxu0 0.0
      %484 = vmatprep.subr.mxu0 0.0
      %485 = vmatpush1.msra.mxu0 0.0
      %486 = vmatprep.subr.mxu0 0.0
      %487 = vmatpush1.msra.mxu0 0.0
      %488 = vmatprep.subr.mxu0 0.0
      %489 = vmatpush1.msra.mxu0 0.0
      %490 = vmatprep.subr.mxu0 0.0
      %491 = vmatpush1.msra.mxu0 0.0
      %492 = vmatprep.subr.mxu0 0.0
      %493 = vmatpush1.msra.mxu0 0.0
      %494 = vmatprep.subr.mxu0 0.0
      %495 = vmatpush1.msra.mxu0 0.0
      %496 = vmatprep.subr.mxu0 0.0
      %497 = vmatpush1.msra.mxu0 0.0
      %498 = vmatprep.subr.mxu0 0.0
      %499 = vmatpush1.msra.mxu0 0.0
      %500 = vmatprep.subr.mxu0 0.0
      %501 = vmatpush1.msra.mxu0 0.0
      %502 = vmatprep.subr.mxu0 0.0
      %503 = vmatpush1.msra.mxu0 0.0
      %504 = vmatprep.subr.mxu0 0.0
      %505 = vmatpush1.msra.mxu0 0.0
      %506 = vmatprep.subr.mxu0 0.0
      %507 = vmatpush1.msra.mxu0 0.0
      %508 = vmatprep.subr.mxu0 0.0
      %509 = vmatpush1.msra.mxu0 0.0
      %510 = vmatprep.mubr.f32.mxu0 0.0
      %511 = vmatmul.mubr.f32.gmra.mrb[0].mxu0 %v444
      %v512 = vpop.f32.mrb[0].mxu0
      %v513 = vadd.f32 0.0, %v512
      %v514 = vpop.f32.mrb[0].mxu0
      %v515 = vadd.f32 0.0, %v514
      %516 = vdwg.mxu0
      %v517 = vsub.f32 0.0, %v513
      %v518 = vsub.f32 0.0, %v515
      %v519 = vmul.f32 %v517, 1.442695
      %v520 = vpow.pop %v519
      %v521 = vmul.f32 %v518, 1.442695
      %v522 = vpow.pop %v521
      %v523 = vadd.f32 %v520, 1.0
      %v524 = vadd.f32 %v522, 1.0
      %v525 = vrcp.pop %v523
      %v526 = vrcp.pop %v524
      %v527 = vld [vmem:[%s4] sm:$0xff]
      %v528 = vld [vmem:[%s4 + $0x8] sm:$0xff]
      %v529 = vld [vmem:[%s4 + $0x10] sm:$0xff]
      %v530 = vld [vmem:[%s4 + $0x18] sm:$0xff]
      %v531 = vld [vmem:[%s4 + $0x20] sm:$0xff]
      %v532 = vld [vmem:[%s4 + $0x28] sm:$0xff]
      %v533 = vld [vmem:[%s4 + $0x30] sm:$0xff]
      %v534 = vld [vmem:[%s4 + $0x38] sm:$0xff]
      %v535 = vld [vmem:[%s4 + $0x40] sm:$0xff]
      %v536 = vld [vmem:[%s4 + $0x48] sm:$0xff]
      %v537 = vld [vmem:[%s4 + $0x50] sm:$0xff]
      %v538 = vld [vmem:[%s4 + $0x58] sm:$0xff]
      %v539 = vld [vmem:[%s4 + $0x60] sm:$0xff]
      %v540 = vld [vmem:[%s4 + $0x68] sm:$0xff]
      %v541 = vld [vmem:[%s4 + $0x70] sm:$0xff]
      %v542 = vld [vmem:[%s4 + $0x78] sm:$0xff]
      %v543 = vld [vmem:[%s4 + $0x80] sm:$0xff]
      %v544 = vld [vmem:[%s4 + $0x88] sm:$0xff]
      %v545 = vld [vmem:[%s4 + $0x90] sm:$0xff]
      %v546 = vld [vmem:[%s4 + $0x98] sm:$0xff]
      %v547 = vld [vmem:[%s4 + $0xa0] sm:$0xff]
      %v548 = vld [vmem:[%s4 + $0xa8] sm:$0xff]
      %v549 = vld [vmem:[%s4 + $0xb0] sm:$0xff]
      %v550 = vld [vmem:[%s4 + $0xb8] sm:$0xff]
      %v551 = vld [vmem:[%s4 + $0xc0] sm:$0xff]
      %v552 = vld [vmem:[%s4 + $0xc8] sm:$0xff]
      %v553 = vld [vmem:[%s4 + $0xd0] sm:$0xff]
      %v554 = vld [vmem:[%s4 + $0xd8] sm:$0xff]
      %v555 = vld [vmem:[%s4 + $0xe0] sm:$0xff]
      %v556 = vld [vmem:[%s4 + $0xe8] sm:$0xff]
      %v557 = vld [vmem:[%s4 + $0xf0] sm:$0xff]
      %v558 = vld [vmem:[%s4 + $0xf8] sm:$0xff]
      %559 = vmatprep.subr.mxu0 0.0
      %560 = vmatpush1.msra.mxu0 %v527
      %561 = vmatprep.subr.mxu0 0.0
      %562 = vmatpush1.msra.mxu0 %v528
      %563 = vmatprep.subr.mxu0 0.0
      %564 = vmatpush1.msra.mxu0 %v529
      %565 = vmatprep.subr.mxu0 0.0
      %566 = vmatpush1.msra.mxu0 %v530
      %567 = vmatprep.subr.mxu0 0.0
      %568 = vmatpush1.msra.mxu0 %v531
      %569 = vmatprep.subr.mxu0 0.0
      %570 = vmatpush1.msra.mxu0 %v532
      %571 = vmatprep.subr.mxu0 0.0
      %572 = vmatpush1.msra.mxu0 %v533
      %573 = vmatprep.subr.mxu0 0.0
      %574 = vmatpush1.msra.mxu0 %v534
      %575 = vmatprep.subr.mxu0 0.0
      %576 = vmatpush1.msra.mxu0 %v535
      %577 = vmatprep.subr.mxu0 0.0
      %578 = vmatpush1.msra.mxu0 %v536
      %579 = vmatprep.subr.mxu0 0.0
      %580 = vmatpush1.msra.mxu0 %v537
      %581 = vmatprep.subr.mxu0 0.0
      %582 = vmatpush1.msra.mxu0 %v538
      %583 = vmatprep.subr.mxu0 0.0
      %584 = vmatpush1.msra.mxu0 %v539
      %585 = vmatprep.subr.mxu0 0.0
      %586 = vmatpush1.msra.mxu0 %v540
      %587 = vmatprep.subr.mxu0 0.0
      %588 = vmatpush1.msra.mxu0 %v541
      %589 = vmatprep.subr.mxu0 0.0
      %590 = vmatpush1.msra.mxu0 %v542
      %591 = vmatprep.subr.mxu0 0.0
      %592 = vmatpush1.msra.mxu0 %v543
      %593 = vmatprep.subr.mxu0 0.0
      %594 = vmatpush1.msra.mxu0 %v544
      %595 = vmatprep.subr.mxu0 0.0
      %596 = vmatpush1.msra.mxu0 %v545
      %597 = vmatprep.subr.mxu0 0.0
      %598 = vmatpush1.msra.mxu0 %v546
      %599 = vmatprep.subr.mxu0 0.0
      %600 = vmatpush1.msra.mxu0 %v547
      %601 = vmatprep.subr.mxu0 0.0
      %602 = vmatpush1.msra.mxu0 %v548
      %603 = vmatprep.subr.mxu0 0.0
      %604 = vmatpush1.msra.mxu0 %v549
      %605 = vmatprep.subr.mxu0 0.0
      %606 = vmatpush1.msra.mxu0 %v550
      %607 = vmatprep.subr.mxu0 0.0
      %608 = vmatpush1.msra.mxu0 %v551
      %609 = vmatprep.subr.mxu0 0.0
      %610 = vmatpush1.msra.mxu0 %v552
      %611 = vmatprep.subr.mxu0 0.0
      %612 = vmatpush1.msra.mxu0 %v553
      %613 = vmatprep.subr.mxu0 0.0
      %614 = vmatpush1.msra.mxu0 %v554
      %615 = vmatprep.subr.mxu0 0.0
      %616 = vmatpush1.msra.mxu0 %v555
      %617 = vmatprep.subr.mxu0 0.0
      %618 = vmatpush1.msra.mxu0 %v556
      %619 = vmatprep.subr.mxu0 0.0
      %620 = vmatpush1.msra.mxu0 %v557
      %621 = vmatprep.subr.mxu0 0.0
      %622 = vmatpush1.msra.mxu0 %v558
      %623 = vmatprep.mubr.f32.mxu0 %v320
      %624 = vmatmul.mubr.f32.gmra.mrb[0].mxu0 %v319
      %v625 = vpop.f32.mrb[0].mxu0
      %v626 = vadd.f32 0.0, %v625
      %v627 = vpop.f32.mrb[0].mxu0
      %628 = vmatprep.mubr.f32.mxu0 %v322
      %629 = vmatmul.mubr.f32.gmra.mrb[0].mxu0 %v321
      %v630 = vpop.f32.mrb[0].mxu0
      %v631 = vadd.f32 0.0, %v630
      %v632 = vpop.f32.mrb[0].mxu0
      %633 = vdwg.mxu0
      %vm636 = vcmask 1042432
      %v637 = vrot.slane %v626, 5
      %v638 = vrot.slane %v631, 5
      %v639 = vsel %vm636, %v637, %v638
      %v642 = vsel %vm636, 0.0, %v637
      %v643 = vsel %vm636, %v638, 0.0
      %v644 = vld [vmem:[%s5] sm:$0xff]
      %v645 = vld [vmem:[%s5 + $0x8] sm:$0xff]
      %v646 = vld [vmem:[%s5 + $0x10] sm:$0xff]
      %v647 = vld [vmem:[%s5 + $0x18] sm:$0xff]
      %v648 = vld [vmem:[%s5 + $0x20] sm:$0xff]
      %v649 = vld [vmem:[%s5 + $0x28] sm:$0xff]
      %v650 = vld [vmem:[%s5 + $0x30] sm:$0xff]
      %v651 = vld [vmem:[%s5 + $0x38] sm:$0xff]
      %v652 = vld [vmem:[%s5 + $0x40] sm:$0xff]
      %v653 = vld [vmem:[%s5 + $0x48] sm:$0xff]
      %v654 = vld [vmem:[%s5 + $0x50] sm:$0xff]
      %v655 = vld [vmem:[%s5 + $0x58] sm:$0xff]
      %v656 = vld [vmem:[%s5 + $0x60] sm:$0xff]
      %v657 = vld [vmem:[%s5 + $0x68] sm:$0xff]
      %v658 = vld [vmem:[%s5 + $0x70] sm:$0xff]
      %v659 = vld [vmem:[%s5 + $0x78] sm:$0xff]
      %s660 = scalar_lea.vmem %s5, 128
      %v661 = vld [vmem:[%s660] sm:$0xff]
      %v662 = vld [vmem:[%s660 + $0x8] sm:$0xff]
      %v663 = vld [vmem:[%s660 + $0x10] sm:$0xff]
      %v664 = vld [vmem:[%s660 + $0x18] sm:$0xff]
      %v665 = vld [vmem:[%s660 + $0x20] sm:$0xff]
      %v666 = vld [vmem:[%s660 + $0x28] sm:$0xff]
      %v667 = vld [vmem:[%s660 + $0x30] sm:$0xff]
      %v668 = vld [vmem:[%s660 + $0x38] sm:$0xff]
      %v669 = vld [vmem:[%s660 + $0x40] sm:$0xff]
      %v670 = vld [vmem:[%s660 + $0x48] sm:$0xff]
      %v671 = vld [vmem:[%s660 + $0x50] sm:$0xff]
      %v672 = vld [vmem:[%s660 + $0x58] sm:$0xff]
      %v673 = vld [vmem:[%s660 + $0x60] sm:$0xff]
      %v674 = vld [vmem:[%s660 + $0x68] sm:$0xff]
      %v675 = vld [vmem:[%s660 + $0x70] sm:$0xff]
      %v676 = vld [vmem:[%s660 + $0x78] sm:$0xff]
      %vm679 = vcmask 1046528
      %v680 = vrot.slane %v642, 1
      %v681 = vrot.slane %v639, 1
      %v682 = vsel %vm679, %v680, %v681
      %v683 = vrot.slane %v643, 1
      %v684 = vsel %vm679, %v681, %v683
      %vm685 = vcmask 523264
      %v686 = vsel %vm685, %v682, 0
      %v688 = vsel %vm685, %v684, 0
      %690 = vmatprep.subr.mxu0 %v662
      %691 = vmatpush1.msra.mxu0 %v661
      %692 = vmatprep.subr.mxu0 %v664
      %693 = vmatpush1.msra.mxu0 %v663
      %694 = vmatprep.subr.mxu0 %v666
      %695 = vmatpush1.msra.mxu0 %v665
      %696 = vmatprep.subr.mxu0 %v668
      %697 = vmatpush1.msra.mxu0 %v667
      %698 = vmatprep.subr.mxu0 %v670
      %699 = vmatpush1.msra.mxu0 %v669
      %700 = vmatprep.subr.mxu0 %v672
      %701 = vmatpush1.msra.mxu0 %v671
      %702 = vmatprep.subr.mxu0 %v674
      %703 = vmatpush1.msra.mxu0 %v673
      %704 = vmatprep.subr.mxu0 %v676
      %705 = vmatpush1.msra.mxu0 %v675
      %706 = vmatprep.subr.mxu0 0.0
      %707 = vmatpush1.msra.mxu0 0.0
      %708 = vmatprep.subr.mxu0 0.0
      %709 = vmatpush1.msra.mxu0 0.0
      %710 = vmatprep.subr.mxu0 0.0
      %711 = vmatpush1.msra.mxu0 0.0
      %712 = vmatprep.subr.mxu0 0.0
      %713 = vmatpush1.msra.mxu0 0.0
      %714 = vmatprep.subr.mxu0 0.0
      %715 = vmatpush1.msra.mxu0 0.0
      %716 = vmatprep.subr.mxu0 0.0
      %717 = vmatpush1.msra.mxu0 0.0
      %718 = vmatprep.subr.mxu0 0.0
      %719 = vmatpush1.msra.mxu0 0.0
      %720 = vmatprep.subr.mxu0 0.0
      %721 = vmatpush1.msra.mxu0 0.0
      %722 = vmatprep.subr.mxu0 0.0
      %723 = vmatpush1.msra.mxu0 0.0
      %724 = vmatprep.subr.mxu0 0.0
      %725 = vmatpush1.msra.mxu0 0.0
      %726 = vmatprep.subr.mxu0 0.0
      %727 = vmatpush1.msra.mxu0 0.0
      %728 = vmatprep.subr.mxu0 0.0
      %729 = vmatpush1.msra.mxu0 0.0
      %730 = vmatprep.subr.mxu0 0.0
      %731 = vmatpush1.msra.mxu0 0.0
      %732 = vmatprep.subr.mxu0 0.0
      %733 = vmatpush1.msra.mxu0 0.0
      %734 = vmatprep.subr.mxu0 0.0
      %735 = vmatpush1.msra.mxu0 0.0
      %736 = vmatprep.subr.mxu0 0.0
      %737 = vmatpush1.msra.mxu0 0.0
      %738 = vmatprep.subr.mxu0 0.0
      %739 = vmatpush1.msra.mxu0 0.0
      %740 = vmatprep.subr.mxu0 0.0
      %741 = vmatpush1.msra.mxu0 0.0
      %742 = vmatprep.subr.mxu0 0.0
      %743 = vmatpush1.msra.mxu0 0.0
      %744 = vmatprep.subr.mxu0 0.0
      %745 = vmatpush1.msra.mxu0 0.0
      %746 = vmatprep.subr.mxu0 0.0
      %747 = vmatpush1.msra.mxu0 0.0
      %748 = vmatprep.subr.mxu0 0.0
      %749 = vmatpush1.msra.mxu0 0.0
      %750 = vmatprep.subr.mxu0 0.0
      %751 = vmatpush1.msra.mxu0 0.0
      %752 = vmatprep.subr.mxu0 0.0
      %753 = vmatpush1.msra.mxu0 0.0
      %754 = vmatprep.mubr.f32.mxu0 0.0
      %755 = vmatmul.mubr.f32.gmra.mrb[0].mxu0 %v686
      %v756 = vpop.f32.mrb[0].mxu0
      %v757 = vadd.f32 0.0, %v756
      %v758 = vpop.f32.mrb[0].mxu0
      %v759 = vadd.f32 0.0, %v758
      %760 = vmatprep.mubr.f32.mxu0 0.0
      %761 = vmatmul.mubr.f32.gmra.mrb[0].mxu0 %v688
      %v762 = vpop.f32.mrb[0].mxu0
      %v763 = vadd.f32 0.0, %v762
      %v764 = vpop.f32.mrb[0].mxu0
      %v765 = vadd.f32 0.0, %v764
      %766 = vdwg.mxu0
      %v767 = vsel %vm685, %v642, 0
      %v769 = vsel %vm685, %v639, 0
      %771 = vmatprep.subr.mxu0 %v645
      %772 = vmatpush1.msra.mxu0 %v644
      %773 = vmatprep.subr.mxu0 %v647
      %774 = vmatpush1.msra.mxu0 %v646
      %775 = vmatprep.subr.mxu0 %v649
      %776 = vmatpush1.msra.mxu0 %v648
      %777 = vmatprep.subr.mxu0 %v651
      %778 = vmatpush1.msra.mxu0 %v650
      %779 = vmatprep.subr.mxu0 %v653
      %780 = vmatpush1.msra.mxu0 %v652
      %781 = vmatprep.subr.mxu0 %v655
      %782 = vmatpush1.msra.mxu0 %v654
      %783 = vmatprep.subr.mxu0 %v657
      %784 = vmatpush1.msra.mxu0 %v656
      %785 = vmatprep.subr.mxu0 %v659
      %786 = vmatpush1.msra.mxu0 %v658
      %787 = vmatprep.subr.mxu0 0.0
      %788 = vmatpush1.msra.mxu0 0.0
      %789 = vmatprep.subr.mxu0 0.0
      %790 = vmatpush1.msra.mxu0 0.0
      %791 = vmatprep.subr.mxu0 0.0
      %792 = vmatpush1.msra.mxu0 0.0
      %793 = vmatprep.subr.mxu0 0.0
      %794 = vmatpush1.msra.mxu0 0.0
      %795 = vmatprep.subr.mxu0 0.0
      %796 = vmatpush1.msra.mxu0 0.0
      %797 = vmatprep.subr.mxu0 0.0
      %798 = vmatpush1.msra.mxu0 0.0
      %799 = vmatprep.subr.mxu0 0.0
      %800 = vmatpush1.msra.mxu0 0.0
      %801 = vmatprep.subr.mxu0 0.0
      %802 = vmatpush1.msra.mxu0 0.0
      %803 = vmatprep.subr.mxu0 0.0
      %804 = vmatpush1.msra.mxu0 0.0
      %805 = vmatprep.subr.mxu0 0.0
      %806 = vmatpush1.msra.mxu0 0.0
      %807 = vmatprep.subr.mxu0 0.0
      %808 = vmatpush1.msra.mxu0 0.0
      %809 = vmatprep.subr.mxu0 0.0
      %810 = vmatpush1.msra.mxu0 0.0
      %811 = vmatprep.subr.mxu0 0.0
      %812 = vmatpush1.msra.mxu0 0.0
      %813 = vmatprep.subr.mxu0 0.0
      %814 = vmatpush1.msra.mxu0 0.0
      %815 = vmatprep.subr.mxu0 0.0
      %816 = vmatpush1.msra.mxu0 0.0
      %817 = vmatprep.subr.mxu0 0.0
      %818 = vmatpush1.msra.mxu0 0.0
      %819 = vmatprep.subr.mxu0 0.0
      %820 = vmatpush1.msra.mxu0 0.0
      %821 = vmatprep.subr.mxu0 0.0
      %822 = vmatpush1.msra.mxu0 0.0
      %823 = vmatprep.subr.mxu0 0.0
      %824 = vmatpush1.msra.mxu0 0.0
      %825 = vmatprep.subr.mxu0 0.0
      %826 = vmatpush1.msra.mxu0 0.0
      %827 = vmatprep.subr.mxu0 0.0
      %828 = vmatpush1.msra.mxu0 0.0
      %829 = vmatprep.subr.mxu0 0.0
      %830 = vmatpush1.msra.mxu0 0.0
      %831 = vmatprep.subr.mxu0 0.0
      %832 = vmatpush1.msra.mxu0 0.0
      %833 = vmatprep.subr.mxu0 0.0
      %834 = vmatpush1.msra.mxu0 0.0
      %835 = vmatprep.mubr.f32.mxu0 0.0
      %836 = vmatmul.mubr.f32.gmra.mrb[0].mxu0 %v767
      %v837 = vpop.f32.mrb[0].mxu0
      %v838 = vadd.f32 %v757, %v837
      %v839 = vpop.f32.mrb[0].mxu0
      %v840 = vadd.f32 %v759, %v839
      %841 = vmatprep.mubr.f32.mxu0 0.0
      %842 = vmatmul.mubr.f32.gmra.mrb[0].mxu0 %v769
      %v843 = vpop.f32.mrb[0].mxu0
      %v844 = vadd.f32 %v763, %v843
      %v845 = vpop.f32.mrb[0].mxu0
      %v846 = vadd.f32 %v765, %v845
      %847 = vdwg.mxu0
      %s848 = scalar_lea.vmem %s5, 256
      %v849 = vld [vmem:[%s848] sm:$0xff]
      %v850 = vld [vmem:[%s848 + $0x8] sm:$0xff]
      %v851 = vld [vmem:[%s848 + $0x10] sm:$0xff]
      %v852 = vld [vmem:[%s848 + $0x18] sm:$0xff]
      %v853 = vld [vmem:[%s848 + $0x20] sm:$0xff]
      %v854 = vld [vmem:[%s848 + $0x28] sm:$0xff]
      %v855 = vld [vmem:[%s848 + $0x30] sm:$0xff]
      %v856 = vld [vmem:[%s848 + $0x38] sm:$0xff]
      %v857 = vld [vmem:[%s848 + $0x40] sm:$0xff]
      %v858 = vld [vmem:[%s848 + $0x48] sm:$0xff]
      %v859 = vld [vmem:[%s848 + $0x50] sm:$0xff]
      %v860 = vld [vmem:[%s848 + $0x58] sm:$0xff]
      %v861 = vld [vmem:[%s848 + $0x60] sm:$0xff]
      %v862 = vld [vmem:[%s848 + $0x68] sm:$0xff]
      %v863 = vld [vmem:[%s848 + $0x70] sm:$0xff]
      %v864 = vld [vmem:[%s848 + $0x78] sm:$0xff]
      %vm865 = vcmask 1045504
      %v866 = vrot.slane %v642, 2
      %v867 = vrot.slane %v639, 2
      %v868 = vsel %vm865, %v866, %v867
      %v869 = vrot.slane %v643, 2
      %v870 = vsel %vm865, %v867, %v869
      %v871 = vsel %vm685, %v868, 0
      %v873 = vsel %vm685, %v870, 0
      %875 = vmatprep.subr.mxu0 %v850
      %876 = vmatpush1.msra.mxu0 %v849
      %877 = vmatprep.subr.mxu0 %v852
      %878 = vmatpush1.msra.mxu0 %v851
      %879 = vmatprep.subr.mxu0 %v854
      %880 = vmatpush1.msra.mxu0 %v853
      %881 = vmatprep.subr.mxu0 %v856
      %882 = vmatpush1.msra.mxu0 %v855
      %883 = vmatprep.subr.mxu0 %v858
      %884 = vmatpush1.msra.mxu0 %v857
      %885 = vmatprep.subr.mxu0 %v860
      %886 = vmatpush1.msra.mxu0 %v859
      %887 = vmatprep.subr.mxu0 %v862
      %888 = vmatpush1.msra.mxu0 %v861
      %889 = vmatprep.subr.mxu0 %v864
      %890 = vmatpush1.msra.mxu0 %v863
      %891 = vmatprep.subr.mxu0 0.0
      %892 = vmatpush1.msra.mxu0 0.0
      %893 = vmatprep.subr.mxu0 0.0
      %894 = vmatpush1.msra.mxu0 0.0
      %895 = vmatprep.subr.mxu0 0.0
      %896 = vmatpush1.msra.mxu0 0.0
      %897 = vmatprep.subr.mxu0 0.0
      %898 = vmatpush1.msra.mxu0 0.0
      %899 = vmatprep.subr.mxu0 0.0
      %900 = vmatpush1.msra.mxu0 0.0
      %901 = vmatprep.subr.mxu0 0.0
      %902 = vmatpush1.msra.mxu0 0.0
      %903 = vmatprep.subr.mxu0 0.0
      %904 = vmatpush1.msra.mxu0 0.0
      %905 = vmatprep.subr.mxu0 0.0
      %906 = vmatpush1.msra.mxu0 0.0
      %907 = vmatprep.subr.mxu0 0.0
      %908 = vmatpush1.msra.mxu0 0.0
      %909 = vmatprep.subr.mxu0 0.0
      %910 = vmatpush1.msra.mxu0 0.0
      %911 = vmatprep.subr.mxu0 0.0
      %912 = vmatpush1.msra.mxu0 0.0
      %913 = vmatprep.subr.mxu0 0.0
      %914 = vmatpush1.msra.mxu0 0.0
      %915 = vmatprep.subr.mxu0 0.0
      %916 = vmatpush1.msra.mxu0 0.0
      %917 = vmatprep.subr.mxu0 0.0
      %918 = vmatpush1.msra.mxu0 0.0
      %919 = vmatprep.subr.mxu0 0.0
      %920 = vmatpush1.msra.mxu0 0.0
      %921 = vmatprep.subr.mxu0 0.0
      %922 = vmatpush1.msra.mxu0 0.0
      %923 = vmatprep.subr.mxu0 0.0
      %924 = vmatpush1.msra.mxu0 0.0
      %925 = vmatprep.subr.mxu0 0.0
      %926 = vmatpush1.msra.mxu0 0.0
      %927 = vmatprep.subr.mxu0 0.0
      %928 = vmatpush1.msra.mxu0 0.0
      %929 = vmatprep.subr.mxu0 0.0
      %930 = vmatpush1.msra.mxu0 0.0
      %931 = vmatprep.subr.mxu0 0.0
      %932 = vmatpush1.msra.mxu0 0.0
      %933 = vmatprep.subr.mxu0 0.0
      %934 = vmatpush1.msra.mxu0 0.0
      %935 = vmatprep.subr.mxu0 0.0
      %936 = vmatpush1.msra.mxu0 0.0
      %937 = vmatprep.subr.mxu0 0.0
      %938 = vmatpush1.msra.mxu0 0.0
      %939 = vmatprep.mubr.f32.mxu0 0.0
      %940 = vmatmul.mubr.f32.gmra.mrb[0].mxu0 %v871
      %v941 = vpop.f32.mrb[0].mxu0
      %v942 = vadd.f32 0.0, %v941
      %v943 = vpop.f32.mrb[0].mxu0
      %v944 = vadd.f32 0.0, %v943
      %945 = vmatprep.mubr.f32.mxu0 0.0
      %946 = vmatmul.mubr.f32.gmra.mrb[0].mxu0 %v873
      %v947 = vpop.f32.mrb[0].mxu0
      %v948 = vadd.f32 0.0, %v947
      %v949 = vpop.f32.mrb[0].mxu0
      %v950 = vadd.f32 0.0, %v949
      %951 = vdwg.mxu0
      %v952 = vadd.f32 %v838, %v942
      %v953 = vadd.f32 %v840, %v944
      %v954 = vadd.f32 %v844, %v948
      %v955 = vadd.f32 %v846, %v950
      %s956 = scalar_lea.vmem %s5, 384
      %v957 = vld [vmem:[%s956] sm:$0xff]
      %v958 = vld [vmem:[%s956 + $0x8] sm:$0xff]
      %v959 = vld [vmem:[%s956 + $0x10] sm:$0xff]
      %v960 = vld [vmem:[%s956 + $0x18] sm:$0xff]
      %v961 = vld [vmem:[%s956 + $0x20] sm:$0xff]
      %v962 = vld [vmem:[%s956 + $0x28] sm:$0xff]
      %v963 = vld [vmem:[%s956 + $0x30] sm:$0xff]
      %v964 = vld [vmem:[%s956 + $0x38] sm:$0xff]
      %v965 = vld [vmem:[%s956 + $0x40] sm:$0xff]
      %v966 = vld [vmem:[%s956 + $0x48] sm:$0xff]
      %v967 = vld [vmem:[%s956 + $0x50] sm:$0xff]
      %v968 = vld [vmem:[%s956 + $0x58] sm:$0xff]
      %v969 = vld [vmem:[%s956 + $0x60] sm:$0xff]
      %v970 = vld [vmem:[%s956 + $0x68] sm:$0xff]
      %v971 = vld [vmem:[%s956 + $0x70] sm:$0xff]
      %v972 = vld [vmem:[%s956 + $0x78] sm:$0xff]
      %vm973 = vcmask 1044480
      %v974 = vrot.slane %v642, 3
      %v975 = vrot.slane %v639, 3
      %v976 = vsel %vm973, %v974, %v975
      %v977 = vrot.slane %v643, 3
      %v978 = vsel %vm973, %v975, %v977
      %v979 = vsel %vm685, %v976, 0
      %v981 = vsel %vm685, %v978, 0
      %983 = vmatprep.subr.mxu0 %v958
      %984 = vmatpush1.msra.mxu0 %v957
      %985 = vmatprep.subr.mxu0 %v960
      %986 = vmatpush1.msra.mxu0 %v959
      %987 = vmatprep.subr.mxu0 %v962
      %988 = vmatpush1.msra.mxu0 %v961
      %989 = vmatprep.subr.mxu0 %v964
      %990 = vmatpush1.msra.mxu0 %v963
      %991 = vmatprep.subr.mxu0 %v966
      %992 = vmatpush1.msra.mxu0 %v965
      %993 = vmatprep.subr.mxu0 %v968
      %994 = vmatpush1.msra.mxu0 %v967
      %995 = vmatprep.subr.mxu0 %v970
      %996 = vmatpush1.msra.mxu0 %v969
      %997 = vmatprep.subr.mxu0 %v972
      %998 = vmatpush1.msra.mxu0 %v971
      %999 = vmatprep.subr.mxu0 0.0
      %1000 = vmatpush1.msra.mxu0 0.0
      %1001 = vmatprep.subr.mxu0 0.0
      %1002 = vmatpush1.msra.mxu0 0.0
      %1003 = vmatprep.subr.mxu0 0.0
      %1004 = vmatpush1.msra.mxu0 0.0
      %1005 = vmatprep.subr.mxu0 0.0
      %1006 = vmatpush1.msra.mxu0 0.0
      %1007 = vmatprep.subr.mxu0 0.0
      %1008 = vmatpush1.msra.mxu0 0.0
      %1009 = vmatprep.subr.mxu0 0.0
      %1010 = vmatpush1.msra.mxu0 0.0
      %1011 = vmatprep.subr.mxu0 0.0
      %1012 = vmatpush1.msra.mxu0 0.0
      %1013 = vmatprep.subr.mxu0 0.0
      %1014 = vmatpush1.msra.mxu0 0.0
      %1015 = vmatprep.subr.mxu0 0.0
      %1016 = vmatpush1.msra.mxu0 0.0
      %1017 = vmatprep.subr.mxu0 0.0
      %1018 = vmatpush1.msra.mxu0 0.0
      %1019 = vmatprep.subr.mxu0 0.0
      %1020 = vmatpush1.msra.mxu0 0.0
      %1021 = vmatprep.subr.mxu0 0.0
      %1022 = vmatpush1.msra.mxu0 0.0
      %1023 = vmatprep.subr.mxu0 0.0
      %1024 = vmatpush1.msra.mxu0 0.0
      %1025 = vmatprep.subr.mxu0 0.0
      %1026 = vmatpush1.msra.mxu0 0.0
      %1027 = vmatprep.subr.mxu0 0.0
      %1028 = vmatpush1.msra.mxu0 0.0
      %1029 = vmatprep.subr.mxu0 0.0
      %1030 = vmatpush1.msra.mxu0 0.0
      %1031 = vmatprep.subr.mxu0 0.0
      %1032 = vmatpush1.msra.mxu0 0.0
      %1033 = vmatprep.subr.mxu0 0.0
      %1034 = vmatpush1.msra.mxu0 0.0
      %1035 = vmatprep.subr.mxu0 0.0
      %1036 = vmatpush1.msra.mxu0 0.0
      %1037 = vmatprep.subr.mxu0 0.0
      %1038 = vmatpush1.msra.mxu0 0.0
      %1039 = vmatprep.subr.mxu0 0.0
      %1040 = vmatpush1.msra.mxu0 0.0
      %1041 = vmatprep.subr.mxu0 0.0
      %1042 = vmatpush1.msra.mxu0 0.0
      %1043 = vmatprep.subr.mxu0 0.0
      %1044 = vmatpush1.msra.mxu0 0.0
      %1045 = vmatprep.subr.mxu0 0.0
      %1046 = vmatpush1.msra.mxu0 0.0
      %1047 = vmatprep.mubr.f32.mxu0 0.0
      %1048 = vmatmul.mubr.f32.gmra.mrb[0].mxu0 %v979
      %v1049 = vpop.f32.mrb[0].mxu0
      %v1050 = vadd.f32 0.0, %v1049
      %v1051 = vpop.f32.mrb[0].mxu0
      %v1052 = vadd.f32 0.0, %v1051
      %1053 = vmatprep.mubr.f32.mxu0 0.0
      %1054 = vmatmul.mubr.f32.gmra.mrb[0].mxu0 %v981
      %v1055 = vpop.f32.mrb[0].mxu0
      %v1056 = vadd.f32 0.0, %v1055
      %v1057 = vpop.f32.mrb[0].mxu0
      %v1058 = vadd.f32 0.0, %v1057
      %1059 = vdwg.mxu0
      %v1060 = vadd.f32 %v952, %v1050
      %v1061 = vadd.f32 %v953, %v1052
      %v1062 = vadd.f32 %v954, %v1056
      %v1063 = vadd.f32 %v955, %v1058
      %s1064 = scalar_lea.vmem %s5, 512
      %v1065 = vld [vmem:[%s1064] sm:$0xff]
      %v1066 = vld [vmem:[%s1064 + $0x8] sm:$0xff]
      %v1067 = vld [vmem:[%s1064 + $0x10] sm:$0xff]
      %v1068 = vld [vmem:[%s1064 + $0x18] sm:$0xff]
      %v1069 = vld [vmem:[%s1064 + $0x20] sm:$0xff]
      %v1070 = vld [vmem:[%s1064 + $0x28] sm:$0xff]
      %v1071 = vld [vmem:[%s1064 + $0x30] sm:$0xff]
      %v1072 = vld [vmem:[%s1064 + $0x38] sm:$0xff]
      %v1073 = vld [vmem:[%s1064 + $0x40] sm:$0xff]
      %v1074 = vld [vmem:[%s1064 + $0x48] sm:$0xff]
      %v1075 = vld [vmem:[%s1064 + $0x50] sm:$0xff]
      %v1076 = vld [vmem:[%s1064 + $0x58] sm:$0xff]
      %v1077 = vld [vmem:[%s1064 + $0x60] sm:$0xff]
      %v1078 = vld [vmem:[%s1064 + $0x68] sm:$0xff]
      %v1079 = vld [vmem:[%s1064 + $0x70] sm:$0xff]
      %v1080 = vld [vmem:[%s1064 + $0x78] sm:$0xff]
      %vm1081 = vcmask 1043456
      %v1082 = vrot.slane %v642, 4
      %v1083 = vrot.slane %v639, 4
      %v1084 = vsel %vm1081, %v1082, %v1083
      %v1085 = vrot.slane %v643, 4
      %v1086 = vsel %vm1081, %v1083, %v1085
      %v1087 = vsel %vm685, %v1084, 0
      %v1089 = vsel %vm685, %v1086, 0
      %1091 = vmatprep.subr.mxu0 %v1066
      %1092 = vmatpush1.msra.mxu0 %v1065
      %1093 = vmatprep.subr.mxu0 %v1068
      %1094 = vmatpush1.msra.mxu0 %v1067
      %1095 = vmatprep.subr.mxu0 %v1070
      %1096 = vmatpush1.msra.mxu0 %v1069
      %1097 = vmatprep.subr.mxu0 %v1072
      %1098 = vmatpush1.msra.mxu0 %v1071
      %1099 = vmatprep.subr.mxu0 %v1074
      %1100 = vmatpush1.msra.mxu0 %v1073
      %1101 = vmatprep.subr.mxu0 %v1076
      %1102 = vmatpush1.msra.mxu0 %v1075
      %1103 = vmatprep.subr.mxu0 %v1078
      %1104 = vmatpush1.msra.mxu0 %v1077
      %1105 = vmatprep.subr.mxu0 %v1080
      %1106 = vmatpush1.msra.mxu0 %v1079
      %1107 = vmatprep.subr.mxu0 0.0
      %1108 = vmatpush1.msra.mxu0 0.0
      %1109 = vmatprep.subr.mxu0 0.0
      %1110 = vmatpush1.msra.mxu0 0.0
      %1111 = vmatprep.subr.mxu0 0.0
      %1112 = vmatpush1.msra.mxu0 0.0
      %1113 = vmatprep.subr.mxu0 0.0
      %1114 = vmatpush1.msra.mxu0 0.0
      %1115 = vmatprep.subr.mxu0 0.0
      %1116 = vmatpush1.msra.mxu0 0.0
      %1117 = vmatprep.subr.mxu0 0.0
      %1118 = vmatpush1.msra.mxu0 0.0
      %1119 = vmatprep.subr.mxu0 0.0
      %1120 = vmatpush1.msra.mxu0 0.0
      %1121 = vmatprep.subr.mxu0 0.0
      %1122 = vmatpush1.msra.mxu0 0.0
      %1123 = vmatprep.subr.mxu0 0.0
      %1124 = vmatpush1.msra.mxu0 0.0
      %1125 = vmatprep.subr.mxu0 0.0
      %1126 = vmatpush1.msra.mxu0 0.0
      %1127 = vmatprep.subr.mxu0 0.0
      %1128 = vmatpush1.msra.mxu0 0.0
      %1129 = vmatprep.subr.mxu0 0.0
      %1130 = vmatpush1.msra.mxu0 0.0
      %1131 = vmatprep.subr.mxu0 0.0
      %1132 = vmatpush1.msra.mxu0 0.0
      %1133 = vmatprep.subr.mxu0 0.0
      %1134 = vmatpush1.msra.mxu0 0.0
      %1135 = vmatprep.subr.mxu0 0.0
      %1136 = vmatpush1.msra.mxu0 0.0
      %1137 = vmatprep.subr.mxu0 0.0
      %1138 = vmatpush1.msra.mxu0 0.0
      %1139 = vmatprep.subr.mxu0 0.0
      %1140 = vmatpush1.msra.mxu0 0.0
      %1141 = vmatprep.subr.mxu0 0.0
      %1142 = vmatpush1.msra.mxu0 0.0
      %1143 = vmatprep.subr.mxu0 0.0
      %1144 = vmatpush1.msra.mxu0 0.0
      %1145 = vmatprep.subr.mxu0 0.0
      %1146 = vmatpush1.msra.mxu0 0.0
      %1147 = vmatprep.subr.mxu0 0.0
      %1148 = vmatpush1.msra.mxu0 0.0
      %1149 = vmatprep.subr.mxu0 0.0
      %1150 = vmatpush1.msra.mxu0 0.0
      %1151 = vmatprep.subr.mxu0 0.0
      %1152 = vmatpush1.msra.mxu0 0.0
      %1153 = vmatprep.subr.mxu0 0.0
      %1154 = vmatpush1.msra.mxu0 0.0
      %1155 = vmatprep.mubr.f32.mxu0 0.0
      %1156 = vmatmul.mubr.f32.gmra.mrb[0].mxu0 %v1087
      %v1157 = vpop.f32.mrb[0].mxu0
      %v1158 = vadd.f32 0.0, %v1157
      %v1159 = vpop.f32.mrb[0].mxu0
      %v1160 = vadd.f32 0.0, %v1159
      %1161 = vmatprep.mubr.f32.mxu0 0.0
      %1162 = vmatmul.mubr.f32.gmra.mrb[0].mxu0 %v1089
      %v1163 = vpop.f32.mrb[0].mxu0
      %v1164 = vadd.f32 0.0, %v1163
      %v1165 = vpop.f32.mrb[0].mxu0
      %v1166 = vadd.f32 0.0, %v1165
      %1167 = vdwg.mxu0
      %v1168 = vadd.f32 %v1060, %v1158
      %v1169 = vadd.f32 %v1061, %v1160
      %v1170 = vadd.f32 %v1062, %v1164
      %v1171 = vadd.f32 %v1063, %v1166
      %s1172 = scalar_lea.vmem %s5, 640
      %v1173 = vld [vmem:[%s1172] sm:$0xff]
      %v1174 = vld [vmem:[%s1172 + $0x8] sm:$0xff]
      %v1175 = vld [vmem:[%s1172 + $0x10] sm:$0xff]
      %v1176 = vld [vmem:[%s1172 + $0x18] sm:$0xff]
      %v1177 = vld [vmem:[%s1172 + $0x20] sm:$0xff]
      %v1178 = vld [vmem:[%s1172 + $0x28] sm:$0xff]
      %v1179 = vld [vmem:[%s1172 + $0x30] sm:$0xff]
      %v1180 = vld [vmem:[%s1172 + $0x38] sm:$0xff]
      %v1181 = vld [vmem:[%s1172 + $0x40] sm:$0xff]
      %v1182 = vld [vmem:[%s1172 + $0x48] sm:$0xff]
      %v1183 = vld [vmem:[%s1172 + $0x50] sm:$0xff]
      %v1184 = vld [vmem:[%s1172 + $0x58] sm:$0xff]
      %v1185 = vld [vmem:[%s1172 + $0x60] sm:$0xff]
      %v1186 = vld [vmem:[%s1172 + $0x68] sm:$0xff]
      %v1187 = vld [vmem:[%s1172 + $0x70] sm:$0xff]
      %v1188 = vld [vmem:[%s1172 + $0x78] sm:$0xff]
      %v1189 = vrot.slane %v642, 5
      %v1190 = vrot.slane %v639, 5
      %v1191 = vsel %vm636, %v1189, %v1190
      %v1192 = vrot.slane %v643, 5
      %v1193 = vsel %vm636, %v1190, %v1192
      %v1194 = vsel %vm685, %v1191, 0
      %v1196 = vsel %vm685, %v1193, 0
      %1198 = vmatprep.subr.mxu0 %v1174
      %1199 = vmatpush1.msra.mxu0 %v1173
      %1200 = vmatprep.subr.mxu0 %v1176
      %1201 = vmatpush1.msra.mxu0 %v1175
      %1202 = vmatprep.subr.mxu0 %v1178
      %1203 = vmatpush1.msra.mxu0 %v1177
      %1204 = vmatprep.subr.mxu0 %v1180
      %1205 = vmatpush1.msra.mxu0 %v1179
      %1206 = vmatprep.subr.mxu0 %v1182
      %1207 = vmatpush1.msra.mxu0 %v1181
      %1208 = vmatprep.subr.mxu0 %v1184
      %1209 = vmatpush1.msra.mxu0 %v1183
      %1210 = vmatprep.subr.mxu0 %v1186
      %1211 = vmatpush1.msra.mxu0 %v1185
      %1212 = vmatprep.subr.mxu0 %v1188
      %1213 = vmatpush1.msra.mxu0 %v1187
      %1214 = vmatprep.subr.mxu0 0.0
      %1215 = vmatpush1.msra.mxu0 0.0
      %1216 = vmatprep.subr.mxu0 0.0
      %1217 = vmatpush1.msra.mxu0 0.0
      %1218 = vmatprep.subr.mxu0 0.0
      %1219 = vmatpush1.msra.mxu0 0.0
      %1220 = vmatprep.subr.mxu0 0.0
      %1221 = vmatpush1.msra.mxu0 0.0
      %1222 = vmatprep.subr.mxu0 0.0
      %1223 = vmatpush1.msra.mxu0 0.0
      %1224 = vmatprep.subr.mxu0 0.0
      %1225 = vmatpush1.msra.mxu0 0.0
      %1226 = vmatprep.subr.mxu0 0.0
      %1227 = vmatpush1.msra.mxu0 0.0
      %1228 = vmatprep.subr.mxu0 0.0
      %1229 = vmatpush1.msra.mxu0 0.0
      %1230 = vmatprep.subr.mxu0 0.0
      %1231 = vmatpush1.msra.mxu0 0.0
      %1232 = vmatprep.subr.mxu0 0.0
      %1233 = vmatpush1.msra.mxu0 0.0
      %1234 = vmatprep.subr.mxu0 0.0
      %1235 = vmatpush1.msra.mxu0 0.0
      %1236 = vmatprep.subr.mxu0 0.0
      %1237 = vmatpush1.msra.mxu0 0.0
      %1238 = vmatprep.subr.mxu0 0.0
      %1239 = vmatpush1.msra.mxu0 0.0
      %1240 = vmatprep.subr.mxu0 0.0
      %1241 = vmatpush1.msra.mxu0 0.0
      %1242 = vmatprep.subr.mxu0 0.0
      %1243 = vmatpush1.msra.mxu0 0.0
      %1244 = vmatprep.subr.mxu0 0.0
      %1245 = vmatpush1.msra.mxu0 0.0
      %1246 = vmatprep.subr.mxu0 0.0
      %1247 = vmatpush1.msra.mxu0 0.0
      %1248 = vmatprep.subr.mxu0 0.0
      %1249 = vmatpush1.msra.mxu0 0.0
      %1250 = vmatprep.subr.mxu0 0.0
      %1251 = vmatpush1.msra.mxu0 0.0
      %1252 = vmatprep.subr.mxu0 0.0
      %1253 = vmatpush1.msra.mxu0 0.0
      %1254 = vmatprep.subr.mxu0 0.0
      %1255 = vmatpush1.msra.mxu0 0.0
      %1256 = vmatprep.subr.mxu0 0.0
      %1257 = vmatpush1.msra.mxu0 0.0
      %1258 = vmatprep.subr.mxu0 0.0
      %1259 = vmatpush1.msra.mxu0 0.0
      %1260 = vmatprep.subr.mxu0 0.0
      %1261 = vmatpush1.msra.mxu0 0.0
      %1262 = vmatprep.mubr.f32.mxu0 0.0
      %1263 = vmatmul.mubr.f32.gmra.mrb[0].mxu0 %v1194
      %v1264 = vpop.f32.mrb[0].mxu0
      %v1265 = vadd.f32 0.0, %v1264
      %v1266 = vpop.f32.mrb[0].mxu0
      %v1267 = vadd.f32 0.0, %v1266
      %1268 = vmatprep.mubr.f32.mxu0 0.0
      %1269 = vmatmul.mubr.f32.gmra.mrb[0].mxu0 %v1196
      %v1270 = vpop.f32.mrb[0].mxu0
      %v1271 = vadd.f32 0.0, %v1270
      %v1272 = vpop.f32.mrb[0].mxu0
      %v1273 = vadd.f32 0.0, %v1272
      %1274 = vdwg.mxu0
      %v1275 = vadd.f32 %v1168, %v1265
      %v1276 = vadd.f32 %v1169, %v1267
      %v1277 = vadd.f32 %v1170, %v1271
      %v1278 = vadd.f32 %v1171, %v1273
      %s1279 = scalar_lea.vmem %s5, 768
      %v1280 = vld [vmem:[%s1279] sm:$0xff]
      %v1281 = vld [vmem:[%s1279 + $0x8] sm:$0xff]
      %v1282 = vld [vmem:[%s1279 + $0x10] sm:$0xff]
      %v1283 = vld [vmem:[%s1279 + $0x18] sm:$0xff]
      %v1284 = vld [vmem:[%s1279 + $0x20] sm:$0xff]
      %v1285 = vld [vmem:[%s1279 + $0x28] sm:$0xff]
      %v1286 = vld [vmem:[%s1279 + $0x30] sm:$0xff]
      %v1287 = vld [vmem:[%s1279 + $0x38] sm:$0xff]
      %v1288 = vld [vmem:[%s1279 + $0x40] sm:$0xff]
      %v1289 = vld [vmem:[%s1279 + $0x48] sm:$0xff]
      %v1290 = vld [vmem:[%s1279 + $0x50] sm:$0xff]
      %v1291 = vld [vmem:[%s1279 + $0x58] sm:$0xff]
      %v1292 = vld [vmem:[%s1279 + $0x60] sm:$0xff]
      %v1293 = vld [vmem:[%s1279 + $0x68] sm:$0xff]
      %v1294 = vld [vmem:[%s1279 + $0x70] sm:$0xff]
      %v1295 = vld [vmem:[%s1279 + $0x78] sm:$0xff]
      %vm1296 = vcmask 1041408
      %v1297 = vrot.slane %v642, 6
      %v1298 = vrot.slane %v639, 6
      %v1299 = vsel %vm1296, %v1297, %v1298
      %v1300 = vrot.slane %v643, 6
      %v1301 = vsel %vm1296, %v1298, %v1300
      %v1302 = vsel %vm685, %v1299, 0
      %v1304 = vsel %vm685, %v1301, 0
      %1306 = vmatprep.subr.mxu0 %v1281
      %1307 = vmatpush1.msra.mxu0 %v1280
      %1308 = vmatprep.subr.mxu0 %v1283
      %1309 = vmatpush1.msra.mxu0 %v1282
      %1310 = vmatprep.subr.mxu0 %v1285
      %1311 = vmatpush1.msra.mxu0 %v1284
      %1312 = vmatprep.subr.mxu0 %v1287
      %1313 = vmatpush1.msra.mxu0 %v1286
      %1314 = vmatprep.subr.mxu0 %v1289
      %1315 = vmatpush1.msra.mxu0 %v1288
      %1316 = vmatprep.subr.mxu0 %v1291
      %1317 = vmatpush1.msra.mxu0 %v1290
      %1318 = vmatprep.subr.mxu0 %v1293
      %1319 = vmatpush1.msra.mxu0 %v1292
      %1320 = vmatprep.subr.mxu0 %v1295
      %1321 = vmatpush1.msra.mxu0 %v1294
      %1322 = vmatprep.subr.mxu0 0.0
      %1323 = vmatpush1.msra.mxu0 0.0
      %1324 = vmatprep.subr.mxu0 0.0
      %1325 = vmatpush1.msra.mxu0 0.0
      %1326 = vmatprep.subr.mxu0 0.0
      %1327 = vmatpush1.msra.mxu0 0.0
      %1328 = vmatprep.subr.mxu0 0.0
      %1329 = vmatpush1.msra.mxu0 0.0
      %1330 = vmatprep.subr.mxu0 0.0
      %1331 = vmatpush1.msra.mxu0 0.0
      %1332 = vmatprep.subr.mxu0 0.0
      %1333 = vmatpush1.msra.mxu0 0.0
      %1334 = vmatprep.subr.mxu0 0.0
      %1335 = vmatpush1.msra.mxu0 0.0
      %1336 = vmatprep.subr.mxu0 0.0
      %1337 = vmatpush1.msra.mxu0 0.0
      %1338 = vmatprep.subr.mxu0 0.0
      %1339 = vmatpush1.msra.mxu0 0.0
      %1340 = vmatprep.subr.mxu0 0.0
      %1341 = vmatpush1.msra.mxu0 0.0
      %1342 = vmatprep.subr.mxu0 0.0
      %1343 = vmatpush1.msra.mxu0 0.0
      %1344 = vmatprep.subr.mxu0 0.0
      %1345 = vmatpush1.msra.mxu0 0.0
      %1346 = vmatprep.subr.mxu0 0.0
      %1347 = vmatpush1.msra.mxu0 0.0
      %1348 = vmatprep.subr.mxu0 0.0
      %1349 = vmatpush1.msra.mxu0 0.0
      %1350 = vmatprep.subr.mxu0 0.0
      %1351 = vmatpush1.msra.mxu0 0.0
      %1352 = vmatprep.subr.mxu0 0.0
      %1353 = vmatpush1.msra.mxu0 0.0
      %1354 = vmatprep.subr.mxu0 0.0
      %1355 = vmatpush1.msra.mxu0 0.0
      %1356 = vmatprep.subr.mxu0 0.0
      %1357 = vmatpush1.msra.mxu0 0.0
      %1358 = vmatprep.subr.mxu0 0.0
      %1359 = vmatpush1.msra.mxu0 0.0
      %1360 = vmatprep.subr.mxu0 0.0
      %1361 = vmatpush1.msra.mxu0 0.0
      %1362 = vmatprep.subr.mxu0 0.0
      %1363 = vmatpush1.msra.mxu0 0.0
      %1364 = vmatprep.subr.mxu0 0.0
      %1365 = vmatpush1.msra.mxu0 0.0
      %1366 = vmatprep.subr.mxu0 0.0
      %1367 = vmatpush1.msra.mxu0 0.0
      %1368 = vmatprep.subr.mxu0 0.0
      %1369 = vmatpush1.msra.mxu0 0.0
      %1370 = vmatprep.mubr.f32.mxu0 0.0
      %1371 = vmatmul.mubr.f32.gmra.mrb[0].mxu0 %v1302
      %v1372 = vpop.f32.mrb[0].mxu0
      %v1373 = vadd.f32 0.0, %v1372
      %v1374 = vpop.f32.mrb[0].mxu0
      %v1375 = vadd.f32 0.0, %v1374
      %1376 = vmatprep.mubr.f32.mxu0 0.0
      %1377 = vmatmul.mubr.f32.gmra.mrb[0].mxu0 %v1304
      %v1378 = vpop.f32.mrb[0].mxu0
      %v1379 = vadd.f32 0.0, %v1378
      %v1380 = vpop.f32.mrb[0].mxu0
      %v1381 = vadd.f32 0.0, %v1380
      %1382 = vdwg.mxu0
      %v1383 = vadd.f32 %v1275, %v1373
      %v1384 = vadd.f32 %v1276, %v1375
      %v1385 = vadd.f32 %v1277, %v1379
      %v1386 = vadd.f32 %v1278, %v1381
      %v1387 = vsub.f32 0.0, %v1383
      %v1388 = vsub.f32 0.0, %v1384
      %v1389 = vsub.f32 0.0, %v1385
      %v1390 = vsub.f32 0.0, %v1386
      %v1391 = vmul.f32 %v1387, 1.442695
      %v1392 = vpow.pop %v1391
      %v1393 = vmul.f32 %v1388, 1.442695
      %v1394 = vpow.pop %v1393
      %v1395 = vmul.f32 %v1389, 1.442695
      %v1396 = vpow.pop %v1395
      %v1397 = vmul.f32 %v1390, 1.442695
      %v1398 = vpow.pop %v1397
      %v1399 = vadd.f32 %v1392, 1.0
      %v1400 = vadd.f32 %v1394, 1.0
      %v1401 = vadd.f32 %v1396, 1.0
      %v1402 = vadd.f32 %v1398, 1.0
      %v1403 = vrcp.pop %v1399
      %v1404 = vrcp.pop %v1400
      %v1405 = vrcp.pop %v1401
      %v1406 = vrcp.pop %v1402
      %v1407 = vlaneseq
      %v1408 = vshrl.u32 %v1407, 7
      %v1409 = vsub.s32 0, %v1408
      %v1410 = vrot.slane %v525, %v1409
      %v1411 = vlaneseq
      %v1412 = vshrl.u32 %v1411, 7
      %v1413 = vsub.s32 0, %v1412
      %v1414 = vrot.slane %v526, %v1413
      %v1415 = vmul.f32 %v319, %v1410
      %v1416 = vmul.f32 %v320, %v1414
      %v1417 = vmul.f32 %v321, %v1410
      %v1418 = vmul.f32 %v322, %v1414
      %v1419 = vmul.f32 %v1415, %v1403
      %v1420 = vmul.f32 %v1416, %v1404
      %v1421 = vmul.f32 %v1417, %v1405
      %v1422 = vmul.f32 %v1418, %v1406
      %v1427 = vcombine.low %v1419, %v1420
      %v1428 = vcombine.high %v1419, %v1420
      %v1430 = vunpack.c.l.s4 1983009808
      %v1431 = vunpack.c.0.s8 %v1430
      %v1432 = vlaneseq
      %v1433 = vshrl.u32 %v1432, 7
      %v1434 = vsub.s32 %v1431, %v1433
      %v1435 = vrot.slane %v1427, %v1434
      %v1437 = vunpack.c.l.s4 1983009808
      %v1438 = vunpack.c.0.s8 %v1437
      %v1439 = vlaneseq
      %v1440 = vshrl.u32 %v1439, 7
      %v1441 = vsub.s32 %v1438, %v1440
      %v1442 = vrot.slane %v1428, %v1441
      %v1443 = vcombine.high %v1435, %v1435
      %v1444 = vcombine.high %v1442, %v1442
      %v1445 = vcombine.low %v1421, %v1422
      %v1446 = vcombine.high %v1421, %v1422
      %v1448 = vunpack.c.l.s4 1983009808
      %v1449 = vunpack.c.0.s8 %v1448
      %v1450 = vlaneseq
      %v1451 = vshrl.u32 %v1450, 7
      %v1452 = vsub.s32 %v1449, %v1451
      %v1453 = vrot.slane %v1445, %v1452
      %v1455 = vunpack.c.l.s4 1983009808
      %v1456 = vunpack.c.0.s8 %v1455
      %v1457 = vlaneseq
      %v1458 = vshrl.u32 %v1457, 7
      %v1459 = vsub.s32 %v1456, %v1458
      %v1460 = vrot.slane %v1446, %v1459
      %v1461 = vcombine.high %v1453, %v1453
      %v1462 = vcombine.high %v1460, %v1460
      %vm1463 = vcmask 1040384
      %vm1464 = vcmask 1042434
      %vm1465 = vmor %vm1463, %vm1464
      %vm1466 = vcmask 1044484
      %vm1467 = vmor %vm1465, %vm1466
      %vm1468 = vcmask 1046534
      %vm1469 = vmor %vm1467, %vm1468
      %v1470 = vrot.slane %v1435, 7
      %v1471 = vrot.slane %v1470, 2
      %v1472 = vrot.slane %v1443, 7
      %v1473 = vsel %vm1469, %v1471, %v1472
      %v1474 = vrot.slane %v1472, 2
      %v1475 = vrot.slane %v1442, 7
      %v1476 = vsel %vm1469, %v1474, %v1475
      %v1477 = vrot.slane %v1475, 2
      %v1478 = vrot.slane %v1444, 7
      %v1479 = vsel %vm1469, %v1477, %v1478
      %v1480 = vrot.slane %v1478, 2
      %v1481 = vrot.slane %v1453, 7
      %v1482 = vsel %vm1469, %v1480, %v1481
      %v1483 = vrot.slane %v1481, 2
      %v1484 = vrot.slane %v1461, 7
      %v1485 = vsel %vm1469, %v1483, %v1484
      %v1486 = vrot.slane %v1484, 2
      %v1487 = vrot.slane %v1460, 7
      %v1488 = vsel %vm1469, %v1486, %v1487
      %v1489 = vrot.slane %v1487, 2
      %v1490 = vrot.slane %v1462, 7
      %v1491 = vsel %vm1469, %v1489, %v1490
      %v1499 = vrot.slane %v1473, 7
      %v1500 = vrot.slane %v1499, 2
      %v1501 = vrot.slane %v1476, 7
      %v1502 = vrot.slane %v1501, 2
      %v1503 = vrot.slane %v1479, 7
      %v1504 = vrot.slane %v1503, 2
      %v1505 = vrot.slane %v1482, 7
      %v1506 = vrot.slane %v1505, 2
      %v1507 = vrot.slane %v1485, 7
      %v1508 = vrot.slane %v1507, 2
      %v1509 = vrot.slane %v1488, 7
      %v1510 = vrot.slane %v1509, 2
      %v1511 = vrot.slane %v1491, 7
      %v1512 = vrot.slane %v1511, 2
      %v1520 = vadd.f32 %v1473, %v1500
      %v1521 = vadd.f32 %v1476, %v1502
      %v1522 = vadd.f32 %v1479, %v1504
      %v1523 = vadd.f32 %v1482, %v1506
      %v1524 = vadd.f32 %v1485, %v1508
      %v1525 = vadd.f32 %v1488, %v1510
      %v1526 = vadd.f32 %v1491, %v1512
      %v1534 = vlaneseq
      %v1535 = vshrl.u32 %v1534, 7
      %v1536 = vsub.s32 0, %v1535
      %v1537 = vrot.slane %v1520, %v1536
      %v1538 = vlaneseq
      %v1539 = vshrl.u32 %v1538, 7
      %v1540 = vsub.s32 2, %v1539
      %v1541 = vrot.slane %v1520, %v1540
      %v1542 = vlaneseq
      %v1543 = vshrl.u32 %v1542, 7
      %v1544 = vsub.s32 0, %v1543
      %v1545 = vrot.slane %v1521, %v1544
      %v1546 = vlaneseq
      %v1547 = vshrl.u32 %v1546, 7
      %v1548 = vsub.s32 2, %v1547
      %v1549 = vrot.slane %v1521, %v1548
      %v1550 = vlaneseq
      %v1551 = vshrl.u32 %v1550, 7
      %v1552 = vsub.s32 0, %v1551
      %v1553 = vrot.slane %v1522, %v1552
      %v1554 = vlaneseq
      %v1555 = vshrl.u32 %v1554, 7
      %v1556 = vsub.s32 2, %v1555
      %v1557 = vrot.slane %v1522, %v1556
      %v1558 = vlaneseq
      %v1559 = vshrl.u32 %v1558, 7
      %v1560 = vsub.s32 0, %v1559
      %v1561 = vrot.slane %v1523, %v1560
      %v1562 = vlaneseq
      %v1563 = vshrl.u32 %v1562, 7
      %v1564 = vsub.s32 2, %v1563
      %v1565 = vrot.slane %v1523, %v1564
      %v1566 = vlaneseq
      %v1567 = vshrl.u32 %v1566, 7
      %v1568 = vsub.s32 0, %v1567
      %v1569 = vrot.slane %v1524, %v1568
      %v1570 = vlaneseq
      %v1571 = vshrl.u32 %v1570, 7
      %v1572 = vsub.s32 2, %v1571
      %v1573 = vrot.slane %v1524, %v1572
      %v1574 = vlaneseq
      %v1575 = vshrl.u32 %v1574, 7
      %v1576 = vsub.s32 0, %v1575
      %v1577 = vrot.slane %v1525, %v1576
      %v1578 = vlaneseq
      %v1579 = vshrl.u32 %v1578, 7
      %v1580 = vsub.s32 2, %v1579
      %v1581 = vrot.slane %v1525, %v1580
      %v1582 = vlaneseq
      %v1583 = vshrl.u32 %v1582, 7
      %v1584 = vsub.s32 0, %v1583
      %v1585 = vrot.slane %v1526, %v1584
      %v1586 = vlaneseq
      %v1587 = vshrl.u32 %v1586, 7
      %v1588 = vsub.s32 2, %v1587
      %v1589 = vrot.slane %v1526, %v1588
      %v1590 = vsel %vm1464, %v1545, %v1537
      %vm1591 = vcmask 1043459
      %v1592 = vsel %vm1591, %v1553, %v1590
      %v1593 = vsel %vm1466, %v1561, %v1592
      %vm1594 = vcmask 1045509
      %v1595 = vsel %vm1594, %v1569, %v1593
      %v1596 = vsel %vm1468, %v1577, %v1595
      %vm1597 = vcmask 1047559
      %v1598 = vsel %vm1597, %v1585, %v1596
      %v1599 = vsel %vm1464, %v1549, %v1541
      %v1600 = vsel %vm1591, %v1557, %v1599
      %v1601 = vsel %vm1466, %v1565, %v1600
      %v1602 = vsel %vm1594, %v1573, %v1601
      %v1603 = vsel %vm1468, %v1581, %v1602
      %v1604 = vsel %vm1597, %v1589, %v1603
      %v1607 = vrot.slane %v1421, 7
      %v1608 = vrot.slane %v1422, 7
      %v1611 = vsel %vm1463, %v1419, %v1598
      %v1612 = vsel %vm1463, %v1420, %v1604
      %v1613 = vpack.c.bf16 %v1607, %v1611
      %v1614 = vpack.c.bf16 %v1608, %v1612
      %v1615 = vld [vmem:[%s6] sm:$0xff]
      %v1616 = vld [vmem:[%s6 + $0x8] sm:$0xf]
      %v1617 = vld [vmem:[%s6 + $0xc] sm:$0xff]
      %v1618 = vld [vmem:[%s6 + $0x14] sm:$0xf]
      %v1619 = vld [vmem:[%s6 + $0x18] sm:$0xff]
      %v1620 = vld [vmem:[%s6 + $0x20] sm:$0xf]
      %v1621 = vld [vmem:[%s6 + $0x24] sm:$0xff]
      %v1622 = vld [vmem:[%s6 + $0x2c] sm:$0xf]
      %v1623 = vld [vmem:[%s6 + $0x30] sm:$0xff]
      %v1624 = vld [vmem:[%s6 + $0x38] sm:$0xf]
      %v1625 = vld [vmem:[%s6 + $0x3c] sm:$0xff]
      %v1626 = vld [vmem:[%s6 + $0x44] sm:$0xf]
      %v1627 = vld [vmem:[%s6 + $0x48] sm:$0xff]
      %v1628 = vld [vmem:[%s6 + $0x50] sm:$0xf]
      %v1629 = vld [vmem:[%s6 + $0x54] sm:$0xff]
      %v1630 = vld [vmem:[%s6 + $0x5c] sm:$0xf]
      %v1631 = vld [vmem:[%s6 + $0x60] sm:$0xff]
      %v1632 = vld [vmem:[%s6 + $0x68] sm:$0xf]
      %v1633 = vld [vmem:[%s6 + $0x6c] sm:$0xff]
      %v1634 = vld [vmem:[%s6 + $0x74] sm:$0xf]
      %v1635 = vld [vmem:[%s6 + $0x78] sm:$0xff]
      %v1636 = vld [vmem:[%s6 + $0x80] sm:$0xf]
      %v1637 = vld [vmem:[%s6 + $0x84] sm:$0xff]
      %v1638 = vld [vmem:[%s6 + $0x8c] sm:$0xf]
      %v1639 = vld [vmem:[%s6 + $0x90] sm:$0xff]
      %v1640 = vld [vmem:[%s6 + $0x98] sm:$0xf]
      %v1641 = vld [vmem:[%s6 + $0x9c] sm:$0xff]
      %v1642 = vld [vmem:[%s6 + $0xa4] sm:$0xf]
      %v1643 = vld [vmem:[%s6 + $0xa8] sm:$0xff]
      %v1644 = vld [vmem:[%s6 + $0xb0] sm:$0xf]
      %v1645 = vld [vmem:[%s6 + $0xb4] sm:$0xff]
      %v1646 = vld [vmem:[%s6 + $0xbc] sm:$0xf]
      %v1647 = vld [vmem:[%s6 + $0xc0] sm:$0xff]
      %v1648 = vld [vmem:[%s6 + $0xc8] sm:$0xf]
      %v1649 = vld [vmem:[%s6 + $0xcc] sm:$0xff]
      %v1650 = vld [vmem:[%s6 + $0xd4] sm:$0xf]
      %v1651 = vld [vmem:[%s6 + $0xd8] sm:$0xff]
      %v1652 = vld [vmem:[%s6 + $0xe0] sm:$0xf]
      %v1653 = vld [vmem:[%s6 + $0xe4] sm:$0xff]
      %v1654 = vld [vmem:[%s6 + $0xec] sm:$0xf]
      %v1655 = vld [vmem:[%s6 + $0xf0] sm:$0xff]
      %v1656 = vld [vmem:[%s6 + $0xf8] sm:$0xf]
      %v1657 = vld [vmem:[%s6 + $0xfc] sm:$0xff]
      %v1658 = vld [vmem:[%s6 + $0x104] sm:$0xf]
      %v1659 = vld [vmem:[%s6 + $0x108] sm:$0xff]
      %v1660 = vld [vmem:[%s6 + $0x110] sm:$0xf]
      %v1661 = vld [vmem:[%s6 + $0x114] sm:$0xff]
      %v1662 = vld [vmem:[%s6 + $0x11c] sm:$0xf]
      %v1663 = vld [vmem:[%s6 + $0x120] sm:$0xff]
      %v1664 = vld [vmem:[%s6 + $0x128] sm:$0xf]
      %v1665 = vld [vmem:[%s6 + $0x12c] sm:$0xff]
      %v1666 = vld [vmem:[%s6 + $0x134] sm:$0xf]
      %v1667 = vld [vmem:[%s6 + $0x138] sm:$0xff]
      %v1668 = vld [vmem:[%s6 + $0x140] sm:$0xf]
      %v1669 = vld [vmem:[%s6 + $0x144] sm:$0xff]
      %v1670 = vld [vmem:[%s6 + $0x14c] sm:$0xf]
      %v1671 = vld [vmem:[%s6 + $0x150] sm:$0xff]
      %v1672 = vld [vmem:[%s6 + $0x158] sm:$0xf]
      %v1673 = vld [vmem:[%s6 + $0x15c] sm:$0xff]
      %v1674 = vld [vmem:[%s6 + $0x164] sm:$0xf]
      %v1675 = vld [vmem:[%s6 + $0x168] sm:$0xff]
      %v1676 = vld [vmem:[%s6 + $0x170] sm:$0xf]
      %v1677 = vld [vmem:[%s6 + $0x174] sm:$0xff]
      %v1678 = vld [vmem:[%s6 + $0x17c] sm:$0xf]
      %v1743 = vunpack.c.l.b16 %v1615
      %v1744 = vunpack.c.h.b16 %v1615
      %v1745 = vunpack.c.l.b16 %v1616
      %v1746 = vunpack.c.l.b16 %v1617
      %v1747 = vunpack.c.h.b16 %v1617
      %v1748 = vunpack.c.l.b16 %v1618
      %v1749 = vunpack.c.l.b16 %v1619
      %v1750 = vunpack.c.h.b16 %v1619
      %v1751 = vunpack.c.l.b16 %v1620
      %v1752 = vunpack.c.l.b16 %v1621
      %v1753 = vunpack.c.h.b16 %v1621
      %v1754 = vunpack.c.l.b16 %v1622
      %v1755 = vunpack.c.l.b16 %v1623
      %v1756 = vunpack.c.h.b16 %v1623
      %v1757 = vunpack.c.l.b16 %v1624
      %v1758 = vunpack.c.l.b16 %v1625
      %v1759 = vunpack.c.h.b16 %v1625
      %v1760 = vunpack.c.l.b16 %v1626
      %v1761 = vunpack.c.l.b16 %v1627
      %v1762 = vunpack.c.h.b16 %v1627
      %v1763 = vunpack.c.l.b16 %v1628
      %v1764 = vunpack.c.l.b16 %v1629
      %v1765 = vunpack.c.h.b16 %v1629
      %v1766 = vunpack.c.l.b16 %v1630
      %v1767 = vunpack.c.l.b16 %v1631
      %v1768 = vunpack.c.h.b16 %v1631
      %v1769 = vunpack.c.l.b16 %v1632
      %v1770 = vunpack.c.l.b16 %v1633
      %v1771 = vunpack.c.h.b16 %v1633
      %v1772 = vunpack.c.l.b16 %v1634
      %v1773 = vunpack.c.l.b16 %v1635
      %v1774 = vunpack.c.h.b16 %v1635
      %v1775 = vunpack.c.l.b16 %v1636
      %v1776 = vunpack.c.l.b16 %v1637
      %v1777 = vunpack.c.h.b16 %v1637
      %v1778 = vunpack.c.l.b16 %v1638
      %v1779 = vunpack.c.l.b16 %v1639
      %v1780 = vunpack.c.h.b16 %v1639
      %v1781 = vunpack.c.l.b16 %v1640
      %v1782 = vunpack.c.l.b16 %v1641
      %v1783 = vunpack.c.h.b16 %v1641
      %v1784 = vunpack.c.l.b16 %v1642
      %v1785 = vunpack.c.l.b16 %v1643
      %v1786 = vunpack.c.h.b16 %v1643
      %v1787 = vunpack.c.l.b16 %v1644
      %v1788 = vunpack.c.l.b16 %v1645
      %v1789 = vunpack.c.h.b16 %v1645
      %v1790 = vunpack.c.l.b16 %v1646
      %v1791 = vunpack.c.l.b16 %v1647
      %v1792 = vunpack.c.h.b16 %v1647
      %v1793 = vunpack.c.l.b16 %v1648
      %v1794 = vunpack.c.l.b16 %v1649
      %v1795 = vunpack.c.h.b16 %v1649
      %v1796 = vunpack.c.l.b16 %v1650
      %v1797 = vunpack.c.l.b16 %v1651
      %v1798 = vunpack.c.h.b16 %v1651
      %v1799 = vunpack.c.l.b16 %v1652
      %v1800 = vunpack.c.l.b16 %v1653
      %v1801 = vunpack.c.h.b16 %v1653
      %v1802 = vunpack.c.l.b16 %v1654
      %v1803 = vunpack.c.l.b16 %v1655
      %v1804 = vunpack.c.h.b16 %v1655
      %v1805 = vunpack.c.l.b16 %v1656
      %v1806 = vunpack.c.l.b16 %v1657
      %v1807 = vunpack.c.h.b16 %v1657
      %v1808 = vunpack.c.l.b16 %v1658
      %v1809 = vunpack.c.l.b16 %v1659
      %v1810 = vunpack.c.h.b16 %v1659
      %v1811 = vunpack.c.l.b16 %v1660
      %v1812 = vunpack.c.l.b16 %v1661
      %v1813 = vunpack.c.h.b16 %v1661
      %v1814 = vunpack.c.l.b16 %v1662
      %v1815 = vunpack.c.l.b16 %v1663
      %v1816 = vunpack.c.h.b16 %v1663
      %v1817 = vunpack.c.l.b16 %v1664
      %v1818 = vunpack.c.l.b16 %v1665
      %v1819 = vunpack.c.h.b16 %v1665
      %v1820 = vunpack.c.l.b16 %v1666
      %v1821 = vunpack.c.l.b16 %v1667
      %v1822 = vunpack.c.h.b16 %v1667
      %v1823 = vunpack.c.l.b16 %v1668
      %v1824 = vunpack.c.l.b16 %v1669
      %v1825 = vunpack.c.h.b16 %v1669
      %v1826 = vunpack.c.l.b16 %v1670
      %v1827 = vunpack.c.l.b16 %v1671
      %v1828 = vunpack.c.h.b16 %v1671
      %v1829 = vunpack.c.l.b16 %v1672
      %v1830 = vunpack.c.l.b16 %v1673
      %v1831 = vunpack.c.h.b16 %v1673
      %v1832 = vunpack.c.l.b16 %v1674
      %v1833 = vunpack.c.l.b16 %v1675
      %v1834 = vunpack.c.h.b16 %v1675
      %v1835 = vunpack.c.l.b16 %v1676
      %v1836 = vunpack.c.l.b16 %v1677
      %v1837 = vunpack.c.h.b16 %v1677
      %v1838 = vunpack.c.l.b16 %v1678
      %v1839 = vpack.c.b16 %v1746, %v1743
      %v1840 = vpack.c.b16 %v1747, %v1744
      %v1841 = vpack.c.b16 %v1748, %v1745
      %v1842 = vpack.c.b16 %v1752, %v1749
      %v1843 = vpack.c.b16 %v1753, %v1750
      %v1844 = vpack.c.b16 %v1754, %v1751
      %v1845 = vpack.c.b16 %v1758, %v1755
      %v1846 = vpack.c.b16 %v1759, %v1756
      %v1847 = vpack.c.b16 %v1760, %v1757
      %v1848 = vpack.c.b16 %v1764, %v1761
      %v1849 = vpack.c.b16 %v1765, %v1762
      %v1850 = vpack.c.b16 %v1766, %v1763
      %v1851 = vpack.c.b16 %v1770, %v1767
      %v1852 = vpack.c.b16 %v1771, %v1768
      %v1853 = vpack.c.b16 %v1772, %v1769
      %v1854 = vpack.c.b16 %v1776, %v1773
      %v1855 = vpack.c.b16 %v1777, %v1774
      %v1856 = vpack.c.b16 %v1778, %v1775
      %v1857 = vpack.c.b16 %v1782, %v1779
      %v1858 = vpack.c.b16 %v1783, %v1780
      %v1859 = vpack.c.b16 %v1784, %v1781
      %v1860 = vpack.c.b16 %v1788, %v1785
      %v1861 = vpack.c.b16 %v1789, %v1786
      %v1862 = vpack.c.b16 %v1790, %v1787
      %v1863 = vpack.c.b16 %v1794, %v1791
      %v1864 = vpack.c.b16 %v1795, %v1792
      %v1865 = vpack.c.b16 %v1796, %v1793
      %v1866 = vpack.c.b16 %v1800, %v1797
      %v1867 = vpack.c.b16 %v1801, %v1798
      %v1868 = vpack.c.b16 %v1802, %v1799
      %v1869 = vpack.c.b16 %v1806, %v1803
      %v1870 = vpack.c.b16 %v1807, %v1804
      %v1871 = vpack.c.b16 %v1808, %v1805
      %v1872 = vpack.c.b16 %v1812, %v1809
      %v1873 = vpack.c.b16 %v1813, %v1810
      %v1874 = vpack.c.b16 %v1814, %v1811
      %v1875 = vpack.c.b16 %v1818, %v1815
      %v1876 = vpack.c.b16 %v1819, %v1816
      %v1877 = vpack.c.b16 %v1820, %v1817
      %v1878 = vpack.c.b16 %v1824, %v1821
      %v1879 = vpack.c.b16 %v1825, %v1822
      %v1880 = vpack.c.b16 %v1826, %v1823
      %v1881 = vpack.c.b16 %v1830, %v1827
      %v1882 = vpack.c.b16 %v1831, %v1828
      %v1883 = vpack.c.b16 %v1832, %v1829
      %v1884 = vpack.c.b16 %v1836, %v1833
      %v1885 = vpack.c.b16 %v1837, %v1834
      %v1886 = vpack.c.b16 %v1838, %v1835
      %1935 = vmatprep.subr.bf16.mxu0 %v1840
      %1936 = vmatpush1.bf16.msra.mxu0 %v1839
      %1937 = vmatprep.subr.bf16.mxu0 %v1843
      %1938 = vmatpush1.bf16.msra.mxu0 %v1842
      %1939 = vmatprep.subr.bf16.mxu0 %v1846
      %1940 = vmatpush1.bf16.msra.mxu0 %v1845
      %1941 = vmatprep.subr.bf16.mxu0 %v1849
      %1942 = vmatpush1.bf16.msra.mxu0 %v1848
      %1943 = vmatprep.subr.bf16.mxu0 %v1852
      %1944 = vmatpush1.bf16.msra.mxu0 %v1851
      %1945 = vmatprep.subr.bf16.mxu0 %v1855
      %1946 = vmatpush1.bf16.msra.mxu0 %v1854
      %1947 = vmatprep.subr.bf16.mxu0 %v1858
      %1948 = vmatpush1.bf16.msra.mxu0 %v1857
      %1949 = vmatprep.subr.bf16.mxu0 %v1861
      %1950 = vmatpush1.bf16.msra.mxu0 %v1860
      %1951 = vmatprep.subr.bf16.mxu0 %v1864
      %1952 = vmatpush1.bf16.msra.mxu0 %v1863
      %1953 = vmatprep.subr.bf16.mxu0 %v1867
      %1954 = vmatpush1.bf16.msra.mxu0 %v1866
      %1955 = vmatprep.subr.bf16.mxu0 %v1870
      %1956 = vmatpush1.bf16.msra.mxu0 %v1869
      %1957 = vmatprep.subr.bf16.mxu0 %v1873
      %1958 = vmatpush1.bf16.msra.mxu0 %v1872
      %1959 = vmatprep.subr.bf16.mxu0 %v1876
      %1960 = vmatpush1.bf16.msra.mxu0 %v1875
      %1961 = vmatprep.subr.bf16.mxu0 %v1879
      %1962 = vmatpush1.bf16.msra.mxu0 %v1878
      %1963 = vmatprep.subr.bf16.mxu0 %v1882
      %1964 = vmatpush1.bf16.msra.mxu0 %v1881
      %1965 = vmatprep.subr.bf16.mxu0 %v1885
      %1966 = vmatpush1.bf16.msra.mxu0 %v1884
      %1967 = vmatprep.mubr.bf16.mxu0 %v1614
      %1968 = vmatmul.mubr.bf16.gmra.mrb[0].mxu0 %v1613
      %v1969 = vpop.f32.mrb[0].mxu0
      %v1970 = vadd.f32 0.0, %v1969
      %v1971 = vpop.f32.mrb[0].mxu0
      %v1972 = vadd.f32 0.0, %v1971
      %v1973 = vpop.f32.mrb[0].mxu0
      %v1974 = vadd.f32 0.0, %v1973
      %v1975 = vpop.f32.mrb[0].mxu0
      %v1976 = vadd.f32 0.0, %v1975
      %1977 = vdwg.mxu0
      %1978 = vmatprep.subr.bf16.mxu0 0
      %1979 = vmatpush1.bf16.msra.mxu0 %v1841
      %1980 = vmatprep.subr.bf16.mxu0 0
      %1981 = vmatpush1.bf16.msra.mxu0 %v1844
      %1982 = vmatprep.subr.bf16.mxu0 0
      %1983 = vmatpush1.bf16.msra.mxu0 %v1847
      %1984 = vmatprep.subr.bf16.mxu0 0
      %1985 = vmatpush1.bf16.msra.mxu0 %v1850
      %1986 = vmatprep.subr.bf16.mxu0 0
      %1987 = vmatpush1.bf16.msra.mxu0 %v1853
      %1988 = vmatprep.subr.bf16.mxu0 0
      %1989 = vmatpush1.bf16.msra.mxu0 %v1856
      %1990 = vmatprep.subr.bf16.mxu0 0
      %1991 = vmatpush1.bf16.msra.mxu0 %v1859
      %1992 = vmatprep.subr.bf16.mxu0 0
      %1993 = vmatpush1.bf16.msra.mxu0 %v1862
      %1994 = vmatprep.subr.bf16.mxu0 0
      %1995 = vmatpush1.bf16.msra.mxu0 %v1865
      %1996 = vmatprep.subr.bf16.mxu0 0
      %1997 = vmatpush1.bf16.msra.mxu0 %v1868
      %1998 = vmatprep.subr.bf16.mxu0 0
      %1999 = vmatpush1.bf16.msra.mxu0 %v1871
      %2000 = vmatprep.subr.bf16.mxu0 0
      %2001 = vmatpush1.bf16.msra.mxu0 %v1874
      %2002 = vmatprep.subr.bf16.mxu0 0
      %2003 = vmatpush1.bf16.msra.mxu0 %v1877
      %2004 = vmatprep.subr.bf16.mxu0 0
      %2005 = vmatpush1.bf16.msra.mxu0 %v1880
      %2006 = vmatprep.subr.bf16.mxu0 0
      %2007 = vmatpush1.bf16.msra.mxu0 %v1883
      %2008 = vmatprep.subr.bf16.mxu0 0
      %2009 = vmatpush1.bf16.msra.mxu0 %v1886
      %2010 = vmatprep.mubr.bf16.mxu0 %v1614
      %2011 = vmatmul.mubr.bf16.gmra.mrb[0].mxu0 %v1613
      %v2012 = vpop.f32.mrb[0].mxu0
      %v2013 = vadd.f32 0.0, %v2012
      %v2014 = vpop.f32.mrb[0].mxu0
      %v2015 = vpop.f32.mrb[0].mxu0
      %v2016 = vadd.f32 0.0, %v2015
      %v2017 = vpop.f32.mrb[0].mxu0
      %2018 = vdwg.mxu0
      %2019 = vst [vmem:[%s278] sm:$0xff] %v1970
      %2020 = vst [vmem:[%s278 + $0x8] sm:$0xff] %v1972
      %vm2021 = vcmask 261120
      %2022 = vst.msk [vmem:[%s278 + $0x10] sm:$0xff] %vm2021, %v2013
      %2023 = vst [vmem:[%s278 + $0x18] sm:$0x1] %v1974
      %2024 = vst [vmem:[%s278 + $0x20] sm:$0x1] %v1976
      %vm2025 = vcmask 253952
      %2026 = vst.msk [vmem:[%s278 + $0x28] sm:$0x1] %vm2025, %v2016
      %p2027 = scmp.lt.s32.totalorder %s18, 1
      %s2028 = scalar_select %p2027, %s18, 1
      %s2029 = smul.addr %s2028, 6
      %s2030 = smul.addr %s2029, 8
      %s2031 = scalar_lea.vmem %s7, %s2030
      // Predicated region
      $region49: #{tpu_custom_call.1} parent=47 // pred_check
        %p2032 = pneg %p188
      $region50: #{tpu_custom_call.1} parent=47 // pred_check_branch
        %2034 = sbr.rel (%p2032) target = $region52
      $region51: #{tpu_custom_call.1} parent=47 // pred_region
        _
      $region52: #{tpu_custom_call.1} parent=47 // pred_fallthru
        _
    $region48: #{tpu_custom_call.1} parent=5 // pred_fallthru
      _
    %p2035 = scmp.le.s32.totalorder 2, %s13
    // Predicated region
    $region53: #{tpu_custom_call.1} parent=5 // pred_check
      %p2036 = pneg %p2035
    $region54: #{tpu_custom_call.1} parent=5 // pred_check_branch
      %2038 = sbr.rel (%p2036) target = $region56
    $region55: #{tpu_custom_call.1} parent=5 // pred_region
      %s2039 = ssub.s32 %s13, 2
      // Predicated region
      $region57: #{tpu_custom_call.1} parent=55 // pred_check
        %p2040 = pneg %p194
      $region58: #{tpu_custom_call.1} parent=55 // pred_check_branch
        %2042 = sbr.rel (%p2040) target = $region60
      $region59: #{tpu_custom_call.1} parent=55 // pred_region
        %p2043 = scmp.lt.s32.totalorder %s19, 1
        %s2044 = scalar_select %p2043, %s19, 1
        %s2045 = smul.addr %s2044, 6
        %s2046 = smul.addr %s2045, 8
        %s2047 = scalar_lea.vmem %s7, %s2046
      $region60: #{tpu_custom_call.1} parent=55 // pred_fallthru
        _
    $region56: #{tpu_custom_call.1} parent=5 // pred_fallthru
      _
  $region6: #{tpu_custom_call.1} parent=0 // loop_footer
    %s17 = sadd.s32 1, %s13
  $region7: #{tpu_custom_call.1} parent=0 // loop_footer_branch
    %12 = sbr.rel target = $region3
  $region8: #{tpu_custom_call.1} parent=0 // loop_exit
    _

</llo_original>
